<compile_context>
chip_gen: v7x
topology: tpu7x:2x2x1
jax: 0.10.0
libtpu: 0.0.40
codegen_flags: <defaults>
</compile_context>

<pallas_src>
import functools

import numpy as np
import jax
import jax.numpy as jnp
from jax import lax
from jax.experimental import pallas as pl
from jax.experimental.pallas import tpu as pltpu


# ----------------------------------------------------------------------------
# Fused kernel: (num_layers x [conv3x3 + ReLU]) + conv3x3 + Sigmoid,
# one batch element per grid step, activations resident in VMEM throughout.
# ----------------------------------------------------------------------------
def _fused_classifier_head_kernel(x_ref, mask_ref, *refs, H, W, num_layers):
    # x_ref    : (1, H*W, Cin)      input activation, NHWC flattened over (H, W)
    # mask_ref : (H*W, 9*Cin)       1.0 where the tap reads inside the image
    # refs     : w_0, b_0, ..., w_{L-1}, b_{L-1}, w_hdr, b_hdr, o_ref
    #            w_l : (9*Cin, Cout_l)  im2col-reshaped conv weight (tap-major K)
    #            b_l : (1, Cout_l)
    # o_ref    : (1, H*W, A*C)
    o_ref = refs[-1]
    wb = refs[:-1]

    HW = H * W
    cin = x_ref.shape[-1]
    # Halo rows so every tap's flat shift (max |offset| = W+1) stays in bounds.
    # Rounded up to a multiple of 8 so the padding concat is tile-aligned.
    PAD = ((W + 1 + 7) // 8) * 8

    patch_mask = mask_ref[...]                       # (HW, 9*Cin)
    zpad = jnp.zeros((PAD, cin), jnp.float32)        # hoisted zero halo

    def im2col(a):
        # a: (HW, Cin) -> (HW, 9*Cin) patch matrix for a 3x3 / stride 1 / pad 1
        # conv.  Tap (dy, dx) of output pixel p = y*W + x reads flat pixel
        # p + (dy-1)*W + (dx-1); with the zero halo every tap is a contiguous
        # sublane slice, and the W-boundary wrap-arounds are zeroed by the mask.
        apad = jnp.concatenate([zpad, a, zpad], axis=0)   # (HW + 2*PAD, Cin)
        pieces = []
        for dy in range(3):
            for dx in range(3):
                start = PAD + (dy - 1) * W + (dx - 1)
                pieces.append(apad[start:start + HW, :])
        return jnp.concatenate(pieces, axis=1) * patch_mask

    a = x_ref[0].astype(jnp.float32)                 # (HW, Cin)
    for l in range(num_layers + 1):                  # static unroll over layers
        w_ref = wb[2 * l]
        b_ref = wb[2 * l + 1]
        patch = im2col(a)                            # (HW, 9*Cin)
        acc = jnp.dot(patch, w_ref[...],
                      preferred_element_type=jnp.float32) + b_ref[...]
        if l < num_layers:
            a = jnp.maximum(acc, 0.0)                # ReLU, stays in VMEM
        else:
            a = jax.nn.sigmoid(acc)                  # header activation

    o_ref[0] = a.astype(o_ref.dtype)


# ----------------------------------------------------------------------------
# Host-side helpers.
# ----------------------------------------------------------------------------
def _make_patch_mask(H, W, cin):
    """(H*W, 9*cin) float32 mask: 1.0 where tap (dy,dx) lands inside the image."""
    m = np.zeros((H, W, 9, cin), np.float32)
    for dy in range(3):
        for dx in range(3):
            tap = dy * 3 + dx
            for y in range(H):
                for x in range(W):
                    yy, xx = y + dy - 1, x + dx - 1
                    if 0 <= yy < H and 0 <= xx < W:
                        m[y, x, tap, :] = 1.0
    return jnp.asarray(m.reshape(H * W, 9 * cin))


def classifier_head_forward(x_nchw, params, num_anchors, num_classes):
    """Forward pass of Classifier_Head. x_nchw: (N, Cin, H, W) float32."""
    num_layers = len(params["layers"])
    N, Cin, H, W = x_nchw.shape
    Cout = num_anchors * num_classes
    HW = H * W

    # NCHW -> (N, H*W, Cin): a single cheap XLA transpose of the input; every
    # conv / activation after this happens inside ONE fused Pallas kernel.
    x = jnp.transpose(x_nchw, (0, 2, 3, 1)).reshape(N, HW, Cin)

    patch_mask = _make_patch_mask(H, W, Cin)

    # Flatten conv weights to im2col layout: (3, 3, Cin, Cout_l) -> (9*Cin, Cout_l)
    # with K ordered (dy, dx, ci), matching the kernel's patch construction.
    flat_params = []
    for w, b in list(params["layers"]) + [params["header"]]:
        cout_l = w.shape[-1]
        flat_params.append(w.reshape(9 * Cin, cout_l))
        flat_params.append(b.reshape(1, cout_l))

    kernel = functools.partial(_fused_classifier_head_kernel,
                               H=H, W=W, num_layers=num_layers)

    in_specs = [
        pl.BlockSpec((1, HW, Cin), lambda n: (n, 0, 0)),      # activation block
        pl.BlockSpec((HW, 9 * Cin), lambda n: (0, 0)),        # boundary mask
    ]
    for p in flat_params:                                     # weights / biases
        in_specs.append(pl.BlockSpec(p.shape, lambda n: (0, 0)))

    out = pl.pallas_call(
        kernel,
        out_shape=jax.ShapeDtypeStruct((N, HW, Cout), jnp.float32),
        grid=(N,),
        in_specs=in_specs,
        out_specs=pl.BlockSpec((1, HW, Cout), lambda n: (n, 0, 0)),
        compiler_params=pltpu.CompilerParams(
            dimension_semantics=("parallel",),
            vmem_limit_bytes=32 * 1024 * 1024,
        ),
    )(x, patch_mask, *flat_params)

    # (N, H*W, A*C) -> (N, H*W*A, C): contiguous row-major, identical to
    # torch's permute(0,2,3,1).contiguous().view(N, -1, C).
    return out.reshape(N, HW * num_anchors, num_classes)


# ----------------------------------------------------------------------------
# Deterministic parameter init (synthetic; not a checkpoint load).
# ----------------------------------------------------------------------------
def init_params(key, in_channels, num_anchors, num_classes, num_layers):
    params = {"layers": [], "header": None}
    fan_in = in_channels * 9
    scale = 1.0 / jnp.sqrt(fan_in)
    for _ in range(num_layers):
        kw, kb, key = jax.random.split(key, 3)
        w = jax.random.uniform(kw, (3, 3, in_channels, in_channels),
                               jnp.float32, -scale, scale)
        b = jax.random.uniform(kb, (in_channels,), jnp.float32, -scale, scale)
        params["layers"].append((w, b))
    kw, kb, key = jax.random.split(key, 3)
    cout = num_anchors * num_classes
    wh = jax.random.uniform(kw, (3, 3, in_channels, cout), jnp.float32, -scale, scale)
    bh = jax.random.uniform(kb, (cout,), jnp.float32, -scale, scale)
    params["header"] = (wh, bh)
    return params


# ----------------------------------------------------------------------------
# Pure-JAX reference (correctness check only).
# ----------------------------------------------------------------------------
def _ref_forward(x_nchw, params, num_anchors, num_classes):
    def conv(x_nhwc, w, b):
        y = lax.conv_general_dilated(
            x_nhwc, w, window_strides=(1, 1), padding="SAME",
            dimension_numbers=("NHWC", "HWIO", "NHWC"))
        return y + b[None, None, None, :]

    x = jnp.transpose(x_nchw, (0, 2, 3, 1))
    for w, b in params["layers"]:
        x = jnp.maximum(conv(x, w, b), 0.0)
    w_h, b_h = params["header"]
    x = jax.nn.sigmoid(conv(x, w_h, b_h))
    N, H, W, _ = x.shape
    return x.reshape(N, H * W * num_anchors, num_classes)


if __name__ == "__main__":
    batch = 2
    in_channels = 8
    H = W = 8
    num_anchors = 3
    num_classes = 5
    num_layers = 2

    key = jax.random.PRNGKey(0)
    kx, kp = jax.random.split(key)
    x = jax.random.normal(kx, (batch, in_channels, H, W), jnp.float32)  # NCHW
    params = init_params(kp, in_channels, num_anchors, num_classes, num_layers)

    fwd = jax.jit(functools.partial(classifier_head_forward,
                                    num_anchors=num_anchors,
                                    num_classes=num_classes))
    out = jax.block_until_ready(fwd(x, params))
    ref = jax.block_until_ready(_ref_forward(x, params, num_anchors, num_classes))

    assert out.shape == (batch, H * W * num_anchors, num_classes), out.shape
    assert jnp.allclose(out, ref, atol=1e-5, rtol=1e-5), "mismatch vs reference"

    print("KERNEL_OK")
</pallas_src>

<mosaic_0001>
module attributes {stable_mosaic.version = 11 : i64} {
  func.func @_fused_classifier_head_kernel(%arg0: i32, %arg1: memref<1x64x8xf32, #tpu.memory_space<vmem>>, %arg2: memref<64x72xf32, #tpu.memory_space<vmem>>, %arg3: memref<72x8xf32, #tpu.memory_space<vmem>>, %arg4: memref<1x8xf32, #tpu.memory_space<vmem>>, %arg5: memref<72x8xf32, #tpu.memory_space<vmem>>, %arg6: memref<1x8xf32, #tpu.memory_space<vmem>>, %arg7: memref<72x15xf32, #tpu.memory_space<vmem>>, %arg8: memref<1x15xf32, #tpu.memory_space<vmem>>, %arg9: memref<1x64x15xf32, #tpu.memory_space<vmem>>) attributes {dimension_semantics = [#tpu.dimension_semantics<parallel>], iteration_bounds = array<i64: 2>, scalar_prefetch = 0 : i64, scratch_operands = 0 : i64, tpu.core_type = #tpu.core_type<tc>, window_params = [{transform_indices = @transform_0, window_bounds = array<i64: 1, 64, 8>}, {pipeline_mode = #tpu.pipeline_mode<synchronous>, transform_indices = @transform_1, window_bounds = array<i64: 64, 72>}, {pipeline_mode = #tpu.pipeline_mode<synchronous>, transform_indices = @transform_2, window_bounds = array<i64: 72, 8>}, {pipeline_mode = #tpu.pipeline_mode<synchronous>, transform_indices = @transform_3, window_bounds = array<i64: 1, 8>}, {pipeline_mode = #tpu.pipeline_mode<synchronous>, transform_indices = @transform_4, window_bounds = array<i64: 72, 8>}, {pipeline_mode = #tpu.pipeline_mode<synchronous>, transform_indices = @transform_5, window_bounds = array<i64: 1, 8>}, {pipeline_mode = #tpu.pipeline_mode<synchronous>, transform_indices = @transform_6, window_bounds = array<i64: 72, 15>}, {pipeline_mode = #tpu.pipeline_mode<synchronous>, transform_indices = @transform_7, window_bounds = array<i64: 1, 15>}, {transform_indices = @transform_8, window_bounds = array<i64: 1, 64, 15>}]} {
    %c0 = arith.constant 0 : index
    %c0_0 = arith.constant 0 : index
    %0 = vector.load %arg2[%c0, %c0_0] : memref<64x72xf32, #tpu.memory_space<vmem>>, vector<64x72xf32>
    %cst = arith.constant 0.000000e+00 : f32
    %1 = vector.broadcast %cst : f32 to vector<16x8xf32>
    %c0_1 = arith.constant 0 : index
    %c0_2 = arith.constant 0 : index
    %c0_3 = arith.constant 0 : index
    %2 = vector.load %arg1[%c0_1, %c0_2, %c0_3] : memref<1x64x8xf32, #tpu.memory_space<vmem>>, vector<1x64x8xf32>
    %3 = vector.shape_cast %2 : vector<1x64x8xf32> to vector<64x8xf32>
    %4 = tpu.concatenate %1, %3, %1 in 0 : vector<16x8xf32>, vector<64x8xf32>, vector<16x8xf32> -> vector<96x8xf32>
    %5 = vector.extract_strided_slice %4 {offsets = [7, 0], sizes = [64, 8], strides = [1, 1]} : vector<96x8xf32> to vector<64x8xf32>
    %6 = vector.extract_strided_slice %4 {offsets = [8, 0], sizes = [64, 8], strides = [1, 1]} : vector<96x8xf32> to vector<64x8xf32>
    %7 = vector.extract_strided_slice %4 {offsets = [9, 0], sizes = [64, 8], strides = [1, 1]} : vector<96x8xf32> to vector<64x8xf32>
    %8 = vector.extract_strided_slice %4 {offsets = [15, 0], sizes = [64, 8], strides = [1, 1]} : vector<96x8xf32> to vector<64x8xf32>
    %9 = vector.extract_strided_slice %4 {offsets = [16, 0], sizes = [64, 8], strides = [1, 1]} : vector<96x8xf32> to vector<64x8xf32>
    %10 = vector.extract_strided_slice %4 {offsets = [17, 0], sizes = [64, 8], strides = [1, 1]} : vector<96x8xf32> to vector<64x8xf32>
    %11 = vector.extract_strided_slice %4 {offsets = [23, 0], sizes = [64, 8], strides = [1, 1]} : vector<96x8xf32> to vector<64x8xf32>
    %12 = vector.extract_strided_slice %4 {offsets = [24, 0], sizes = [64, 8], strides = [1, 1]} : vector<96x8xf32> to vector<64x8xf32>
    %13 = vector.extract_strided_slice %4 {offsets = [25, 0], sizes = [64, 8], strides = [1, 1]} : vector<96x8xf32> to vector<64x8xf32>
    %14 = tpu.concatenate %5, %6, %7, %8, %9, %10, %11, %12, %13 in 1 : vector<64x8xf32>, vector<64x8xf32>, vector<64x8xf32>, vector<64x8xf32>, vector<64x8xf32>, vector<64x8xf32>, vector<64x8xf32>, vector<64x8xf32>, vector<64x8xf32> -> vector<64x72xf32>
    %15 = arith.mulf %14, %0 : vector<64x72xf32>
    %c0_4 = arith.constant 0 : index
    %c0_5 = arith.constant 0 : index
    %16 = vector.load %arg3[%c0_4, %c0_5] : memref<72x8xf32, #tpu.memory_space<vmem>>, vector<72x8xf32>
    %cst_6 = arith.constant dense<0.000000e+00> : vector<64x8xf32>
    %17 = tpu.matmul %15, %16, %cst_6 {dimension_numbers = #tpu.dot_dimension_numbers<[1], [0], [0], [1], [0, 0, 1, 1], [], []>} : vector<64x72xf32>, vector<72x8xf32>, vector<64x8xf32> -> vector<64x8xf32>
    %c0_7 = arith.constant 0 : index
    %c0_8 = arith.constant 0 : index
    %18 = vector.load %arg4[%c0_7, %c0_8] : memref<1x8xf32, #tpu.memory_space<vmem>>, vector<1x8xf32>
    %19 = vector.broadcast %18 : vector<1x8xf32> to vector<64x8xf32>
    %20 = arith.addf %17, %19 : vector<64x8xf32>
    %cst_9 = arith.constant 0.000000e+00 : f32
    %21 = vector.broadcast %cst_9 : f32 to vector<64x8xf32>
    %22 = arith.maximumf %20, %21 : vector<64x8xf32>
    %23 = tpu.concatenate %1, %22, %1 in 0 : vector<16x8xf32>, vector<64x8xf32>, vector<16x8xf32> -> vector<96x8xf32>
    %24 = vector.extract_strided_slice %23 {offsets = [7, 0], sizes = [64, 8], strides = [1, 1]} : vector<96x8xf32> to vector<64x8xf32>
    %25 = vector.extract_strided_slice %23 {offsets = [8, 0], sizes = [64, 8], strides = [1, 1]} : vector<96x8xf32> to vector<64x8xf32>
    %26 = vector.extract_strided_slice %23 {offsets = [9, 0], sizes = [64, 8], strides = [1, 1]} : vector<96x8xf32> to vector<64x8xf32>
    %27 = vector.extract_strided_slice %23 {offsets = [15, 0], sizes = [64, 8], strides = [1, 1]} : vector<96x8xf32> to vector<64x8xf32>
    %28 = vector.extract_strided_slice %23 {offsets = [16, 0], sizes = [64, 8], strides = [1, 1]} : vector<96x8xf32> to vector<64x8xf32>
    %29 = vector.extract_strided_slice %23 {offsets = [17, 0], sizes = [64, 8], strides = [1, 1]} : vector<96x8xf32> to vector<64x8xf32>
    %30 = vector.extract_strided_slice %23 {offsets = [23, 0], sizes = [64, 8], strides = [1, 1]} : vector<96x8xf32> to vector<64x8xf32>
    %31 = vector.extract_strided_slice %23 {offsets = [24, 0], sizes = [64, 8], strides = [1, 1]} : vector<96x8xf32> to vector<64x8xf32>
    %32 = vector.extract_strided_slice %23 {offsets = [25, 0], sizes = [64, 8], strides = [1, 1]} : vector<96x8xf32> to vector<64x8xf32>
    %33 = tpu.concatenate %24, %25, %26, %27, %28, %29, %30, %31, %32 in 1 : vector<64x8xf32>, vector<64x8xf32>, vector<64x8xf32>, vector<64x8xf32>, vector<64x8xf32>, vector<64x8xf32>, vector<64x8xf32>, vector<64x8xf32>, vector<64x8xf32> -> vector<64x72xf32>
    %34 = arith.mulf %33, %0 : vector<64x72xf32>
    %c0_10 = arith.constant 0 : index
    %c0_11 = arith.constant 0 : index
    %35 = vector.load %arg5[%c0_10, %c0_11] : memref<72x8xf32, #tpu.memory_space<vmem>>, vector<72x8xf32>
    %cst_12 = arith.constant dense<0.000000e+00> : vector<64x8xf32>
    %36 = tpu.matmul %34, %35, %cst_12 {dimension_numbers = #tpu.dot_dimension_numbers<[1], [0], [0], [1], [0, 0, 1, 1], [], []>} : vector<64x72xf32>, vector<72x8xf32>, vector<64x8xf32> -> vector<64x8xf32>
    %c0_13 = arith.constant 0 : index
    %c0_14 = arith.constant 0 : index
    %37 = vector.load %arg6[%c0_13, %c0_14] : memref<1x8xf32, #tpu.memory_space<vmem>>, vector<1x8xf32>
    %38 = vector.broadcast %37 : vector<1x8xf32> to vector<64x8xf32>
    %39 = arith.addf %36, %38 : vector<64x8xf32>
    %cst_15 = arith.constant 0.000000e+00 : f32
    %40 = vector.broadcast %cst_15 : f32 to vector<64x8xf32>
    %41 = arith.maximumf %39, %40 : vector<64x8xf32>
    %42 = tpu.concatenate %1, %41, %1 in 0 : vector<16x8xf32>, vector<64x8xf32>, vector<16x8xf32> -> vector<96x8xf32>
    %43 = vector.extract_strided_slice %42 {offsets = [7, 0], sizes = [64, 8], strides = [1, 1]} : vector<96x8xf32> to vector<64x8xf32>
    %44 = vector.extract_strided_slice %42 {offsets = [8, 0], sizes = [64, 8], strides = [1, 1]} : vector<96x8xf32> to vector<64x8xf32>
    %45 = vector.extract_strided_slice %42 {offsets = [9, 0], sizes = [64, 8], strides = [1, 1]} : vector<96x8xf32> to vector<64x8xf32>
    %46 = vector.extract_strided_slice %42 {offsets = [15, 0], sizes = [64, 8], strides = [1, 1]} : vector<96x8xf32> to vector<64x8xf32>
    %47 = vector.extract_strided_slice %42 {offsets = [16, 0], sizes = [64, 8], strides = [1, 1]} : vector<96x8xf32> to vector<64x8xf32>
    %48 = vector.extract_strided_slice %42 {offsets = [17, 0], sizes = [64, 8], strides = [1, 1]} : vector<96x8xf32> to vector<64x8xf32>
    %49 = vector.extract_strided_slice %42 {offsets = [23, 0], sizes = [64, 8], strides = [1, 1]} : vector<96x8xf32> to vector<64x8xf32>
    %50 = vector.extract_strided_slice %42 {offsets = [24, 0], sizes = [64, 8], strides = [1, 1]} : vector<96x8xf32> to vector<64x8xf32>
    %51 = vector.extract_strided_slice %42 {offsets = [25, 0], sizes = [64, 8], strides = [1, 1]} : vector<96x8xf32> to vector<64x8xf32>
    %52 = tpu.concatenate %43, %44, %45, %46, %47, %48, %49, %50, %51 in 1 : vector<64x8xf32>, vector<64x8xf32>, vector<64x8xf32>, vector<64x8xf32>, vector<64x8xf32>, vector<64x8xf32>, vector<64x8xf32>, vector<64x8xf32>, vector<64x8xf32> -> vector<64x72xf32>
    %53 = arith.mulf %52, %0 : vector<64x72xf32>
    %c0_16 = arith.constant 0 : index
    %c0_17 = arith.constant 0 : index
    %54 = vector.load %arg7[%c0_16, %c0_17] : memref<72x15xf32, #tpu.memory_space<vmem>>, vector<72x15xf32>
    %cst_18 = arith.constant dense<0.000000e+00> : vector<64x15xf32>
    %55 = tpu.matmul %53, %54, %cst_18 {dimension_numbers = #tpu.dot_dimension_numbers<[1], [0], [0], [1], [0, 0, 1, 1], [], []>} : vector<64x72xf32>, vector<72x15xf32>, vector<64x15xf32> -> vector<64x15xf32>
    %c0_19 = arith.constant 0 : index
    %c0_20 = arith.constant 0 : index
    %56 = vector.load %arg8[%c0_19, %c0_20] : memref<1x15xf32, #tpu.memory_space<vmem>>, vector<1x15xf32>
    %57 = vector.broadcast %56 : vector<1x15xf32> to vector<64x15xf32>
    %58 = arith.addf %55, %57 : vector<64x15xf32>
    %59 = arith.negf %58 : vector<64x15xf32>
    %60 = math.exp %59 : vector<64x15xf32>
    %cst_21 = arith.constant 1.000000e+00 : f32
    %61 = vector.broadcast %cst_21 : f32 to vector<64x15xf32>
    %62 = arith.addf %61, %60 : vector<64x15xf32>
    %63 = arith.divf %61, %62 : vector<64x15xf32>
    %c0_22 = arith.constant 0 : index
    %c0_23 = arith.constant 0 : index
    %c0_24 = arith.constant 0 : index
    %64 = vector.load %arg9[%c0_22, %c0_23, %c0_24] : memref<1x64x15xf32, #tpu.memory_space<vmem>>, vector<1x64x15xf32>
    %65 = vector.shape_cast %64 : vector<1x64x15xf32> to vector<64x15xf32>
    %66 = vector.shape_cast %63 : vector<64x15xf32> to vector<1x64x15xf32>
    tpu.vector_store %arg9[%c0_22, %c0_23, %c0_24], %66 {strides = array<i32>} : memref<1x64x15xf32, #tpu.memory_space<vmem>>, vector<1x64x15xf32>,
    return
  }
  func.func @transform_0(%arg0: i32) -> (i32, i32, i32) {
    %c0_i32 = arith.constant 0 : i32
    %c0_i32_0 = arith.constant 0 : i32
    %c0_i32_1 = arith.constant 0 : i32
    return %arg0, %c0_i32, %c0_i32_0 : i32, i32, i32
  }
  func.func @transform_1(%arg0: i32) -> (i32, i32) {
    %c0_i32 = arith.constant 0 : i32
    %c0_i32_0 = arith.constant 0 : i32
    %c0_i32_1 = arith.constant 0 : i32
    return %c0_i32, %c0_i32_0 : i32, i32
  }
  func.func @transform_2(%arg0: i32) -> (i32, i32) {
    %c0_i32 = arith.constant 0 : i32
    %c0_i32_0 = arith.constant 0 : i32
    %c0_i32_1 = arith.constant 0 : i32
    return %c0_i32, %c0_i32_0 : i32, i32
  }
  func.func @transform_3(%arg0: i32) -> (i32, i32) {
    %c0_i32 = arith.constant 0 : i32
    %c0_i32_0 = arith.constant 0 : i32
    %c0_i32_1 = arith.constant 0 : i32
    return %c0_i32, %c0_i32_0 : i32, i32
  }
  func.func @transform_4(%arg0: i32) -> (i32, i32) {
    %c0_i32 = arith.constant 0 : i32
    %c0_i32_0 = arith.constant 0 : i32
    %c0_i32_1 = arith.constant 0 : i32
    return %c0_i32, %c0_i32_0 : i32, i32
  }
  func.func @transform_5(%arg0: i32) -> (i32, i32) {
    %c0_i32 = arith.constant 0 : i32
    %c0_i32_0 = arith.constant 0 : i32
    %c0_i32_1 = arith.constant 0 : i32
    return %c0_i32, %c0_i32_0 : i32, i32
  }
  func.func @transform_6(%arg0: i32) -> (i32, i32) {
    %c0_i32 = arith.constant 0 : i32
    %c0_i32_0 = arith.constant 0 : i32
    %c0_i32_1 = arith.constant 0 : i32
    return %c0_i32, %c0_i32_0 : i32, i32
  }
  func.func @transform_7(%arg0: i32) -> (i32, i32) {
    %c0_i32 = arith.constant 0 : i32
    %c0_i32_0 = arith.constant 0 : i32
    %c0_i32_1 = arith.constant 0 : i32
    return %c0_i32, %c0_i32_0 : i32, i32
  }
  func.func @transform_8(%arg0: i32) -> (i32, i32, i32) {
    %c0_i32 = arith.constant 0 : i32
    %c0_i32_0 = arith.constant 0 : i32
    %c0_i32_1 = arith.constant 0 : i32
    return %arg0, %c0_i32, %c0_i32_0 : i32, i32, i32
  }
}

</mosaic_0001>

<llo_original>
// kernel: classifier_head_forward.1
$region0: #{classifier_head_forward.1}
  #allocation0 [shape = 'u32[]', space=smem, size = 0x4, offset = 0x4, fixed_abs, tag = 'smem constant byte address 0x4 - core index']
  #allocation1 [shape = 'u32[144,128]{1,0:T(1,128)}', space=vmem, size = 0x12000, scoped, tag = 'internal scratch']
  %s0 = inlined_call_operand.vmem [shape: f32[2,64,8], index: 0, kind: input, shape index: {}]
  %s1 = inlined_call_operand.vmem [shape: f32[64,72], index: 1, kind: input, shape index: {}]
  %s2 = inlined_call_operand.vmem [shape: f32[72,8], index: 2, kind: input, shape index: {}]
  %s3 = inlined_call_operand.vmem [shape: f32[1,8], index: 3, kind: input, shape index: {}]
  %s4 = inlined_call_operand.vmem [shape: f32[72,8], index: 4, kind: input, shape index: {}]
  %s5 = inlined_call_operand.vmem [shape: f32[1,8], index: 5, kind: input, shape index: {}]
  %s6 = inlined_call_operand.vmem [shape: f32[72,15], index: 6, kind: input, shape index: {}]
  %s7 = inlined_call_operand.vmem [shape: f32[1,15], index: 7, kind: input, shape index: {}]
  %s8 = inlined_call_operand.vmem [shape: f32[2,64,15], index: 8, kind: output, shape index: {}]
  %s9 = sld [smem:[#allocation0]]
  $region65: #{classifier_head_forward.1} parent=0
    _
  %s11 = ssub.s32 1, %s9
  %s12 = scalar_select 0, %s11, %s9
  loop: start=0, step=1, limit=4
  $region2: #{classifier_head_forward.1} parent=0 // loop_pre_header
    _
  $region3: #{classifier_head_forward.1} parent=0 // loop_header
    %s14 = sphi 0, %s18
    %p15 = scmp.ge.s32.totalorder %s14, 4
    %s24 = sphi 0, %s26
    %s27 = sphi 0, %s24
    %s28 = sphi 0, %s27
    %s44 = sphi 0, %s28
    %s48 = sphi 0, %s48
    %s50 = sphi 0, %s48
    %s51 = sphi 0, %s50
    %s65 = sphi 0, %s51
    %s69 = sphi 0, %s69
    %s71 = sphi 0, %s69
    %s72 = sphi 0, %s71
    %s86 = sphi 0, %s72
    %s90 = sphi 0, %s90
    %s92 = sphi 0, %s90
    %s93 = sphi 0, %s92
    %s107 = sphi 0, %s93
    %s111 = sphi 0, %s111
    %s113 = sphi 0, %s111
    %s114 = sphi 0, %s113
    %s128 = sphi 0, %s114
    %s132 = sphi 0, %s132
    %s134 = sphi 0, %s132
    %s135 = sphi 0, %s134
    %s149 = sphi 0, %s135
    %s153 = sphi 0, %s153
    %s155 = sphi 0, %s153
    %s156 = sphi 0, %s155
    %s170 = sphi 0, %s156
    %s174 = sphi 0, %s174
    %s176 = sphi 0, %s174
    %s177 = sphi 0, %s176
    %s191 = sphi 0, %s177
    %s197 = sphi 0, %s199
    %s200 = sphi 0, %s197
    %s201 = sphi 0, %s200
    %s217 = sphi 0, %s201
  $region4: #{classifier_head_forward.1} parent=0 // loop_header_branch
    %17 = sbr.rel (%p15) target = $region8
  $region5: #{classifier_head_forward.1} parent=0 // loop_body
    %s19 = ssub.s32 %s14, 1
    %s20 = ssub.s32 %s14, 2
    %s21 = sadd.s32 %s14, 1
    %s22 = ssub.s32 %s14, %s21
    %p23 = scmp.eq.s32.totalorder %s22, 0
    %s25 = sadd.s32 %s24, 1
    %s26 = scalar_select %p23, %s24, %s25
    %p29 = pneg %p23
    %p30 = scmp.eq.s32.totalorder %s14, 1
    %p31 = por %p29, %p30
    %p32 = scmp.ne.s32.totalorder %s24, %s27
    %p33 = scmp.eq.s32.totalorder %s14, 0
    %p34 = por %p32, %p33
    %p35 = scmp.ne.s32.totalorder %s24, %s27
    %p36 = scmp.eq.s32.totalorder %s19, 1
    %p37 = por %p35, %p36
    %p38 = scmp.ne.s32.totalorder %s27, %s28
    %p39 = scmp.eq.s32.totalorder %s19, 0
    %p40 = por %p38, %p39
    %p41 = scmp.ne.s32.totalorder %s27, %s28
    %p42 = scmp.eq.s32.totalorder %s20, 1
    %p43 = por %p41, %p42
    %p45 = scmp.ne.s32.totalorder %s28, %s44
    %p46 = scmp.eq.s32.totalorder %s20, 0
    %p47 = por %p45, %p46
    %s49 = sadd.s32 %s48, 1
    %p52 = scmp.eq.s32.totalorder %s14, 1
    %p53 = scmp.ne.s32.totalorder %s48, %s50
    %p54 = scmp.eq.s32.totalorder %s14, 0
    %p55 = por %p53, %p54
    %p56 = scmp.ne.s32.totalorder %s48, %s50
    %p57 = scmp.eq.s32.totalorder %s19, 1
    %p58 = por %p56, %p57
    %p59 = scmp.ne.s32.totalorder %s50, %s51
    %p60 = scmp.eq.s32.totalorder %s19, 0
    %p61 = por %p59, %p60
    %p62 = scmp.ne.s32.totalorder %s50, %s51
    %p63 = scmp.eq.s32.totalorder %s20, 1
    %p64 = por %p62, %p63
    %p66 = scmp.ne.s32.totalorder %s51, %s65
    %p67 = scmp.eq.s32.totalorder %s20, 0
    %p68 = por %p66, %p67
    %s70 = sadd.s32 %s69, 1
    %p73 = scmp.eq.s32.totalorder %s14, 1
    %p74 = scmp.ne.s32.totalorder %s69, %s71
    %p75 = scmp.eq.s32.totalorder %s14, 0
    %p76 = por %p74, %p75
    %p77 = scmp.ne.s32.totalorder %s69, %s71
    %p78 = scmp.eq.s32.totalorder %s19, 1
    %p79 = por %p77, %p78
    %p80 = scmp.ne.s32.totalorder %s71, %s72
    %p81 = scmp.eq.s32.totalorder %s19, 0
    %p82 = por %p80, %p81
    %p83 = scmp.ne.s32.totalorder %s71, %s72
    %p84 = scmp.eq.s32.totalorder %s20, 1
    %p85 = por %p83, %p84
    %p87 = scmp.ne.s32.totalorder %s72, %s86
    %p88 = scmp.eq.s32.totalorder %s20, 0
    %p89 = por %p87, %p88
    %s91 = sadd.s32 %s90, 1
    %p94 = scmp.eq.s32.totalorder %s14, 1
    %p95 = scmp.ne.s32.totalorder %s90, %s92
    %p96 = scmp.eq.s32.totalorder %s14, 0
    %p97 = por %p95, %p96
    %p98 = scmp.ne.s32.totalorder %s90, %s92
    %p99 = scmp.eq.s32.totalorder %s19, 1
    %p100 = por %p98, %p99
    %p101 = scmp.ne.s32.totalorder %s92, %s93
    %p102 = scmp.eq.s32.totalorder %s19, 0
    %p103 = por %p101, %p102
    %p104 = scmp.ne.s32.totalorder %s92, %s93
    %p105 = scmp.eq.s32.totalorder %s20, 1
    %p106 = por %p104, %p105
    %p108 = scmp.ne.s32.totalorder %s93, %s107
    %p109 = scmp.eq.s32.totalorder %s20, 0
    %p110 = por %p108, %p109
    %s112 = sadd.s32 %s111, 1
    %p115 = scmp.eq.s32.totalorder %s14, 1
    %p116 = scmp.ne.s32.totalorder %s111, %s113
    %p117 = scmp.eq.s32.totalorder %s14, 0
    %p118 = por %p116, %p117
    %p119 = scmp.ne.s32.totalorder %s111, %s113
    %p120 = scmp.eq.s32.totalorder %s19, 1
    %p121 = por %p119, %p120
    %p122 = scmp.ne.s32.totalorder %s113, %s114
    %p123 = scmp.eq.s32.totalorder %s19, 0
    %p124 = por %p122, %p123
    %p125 = scmp.ne.s32.totalorder %s113, %s114
    %p126 = scmp.eq.s32.totalorder %s20, 1
    %p127 = por %p125, %p126
    %p129 = scmp.ne.s32.totalorder %s114, %s128
    %p130 = scmp.eq.s32.totalorder %s20, 0
    %p131 = por %p129, %p130
    %s133 = sadd.s32 %s132, 1
    %p136 = scmp.eq.s32.totalorder %s14, 1
    %p137 = scmp.ne.s32.totalorder %s132, %s134
    %p138 = scmp.eq.s32.totalorder %s14, 0
    %p139 = por %p137, %p138
    %p140 = scmp.ne.s32.totalorder %s132, %s134
    %p141 = scmp.eq.s32.totalorder %s19, 1
    %p142 = por %p140, %p141
    %p143 = scmp.ne.s32.totalorder %s134, %s135
    %p144 = scmp.eq.s32.totalorder %s19, 0
    %p145 = por %p143, %p144
    %p146 = scmp.ne.s32.totalorder %s134, %s135
    %p147 = scmp.eq.s32.totalorder %s20, 1
    %p148 = por %p146, %p147
    %p150 = scmp.ne.s32.totalorder %s135, %s149
    %p151 = scmp.eq.s32.totalorder %s20, 0
    %p152 = por %p150, %p151
    %s154 = sadd.s32 %s153, 1
    %p157 = scmp.eq.s32.totalorder %s14, 1
    %p158 = scmp.ne.s32.totalorder %s153, %s155
    %p159 = scmp.eq.s32.totalorder %s14, 0
    %p160 = por %p158, %p159
    %p161 = scmp.ne.s32.totalorder %s153, %s155
    %p162 = scmp.eq.s32.totalorder %s19, 1
    %p163 = por %p161, %p162
    %p164 = scmp.ne.s32.totalorder %s155, %s156
    %p165 = scmp.eq.s32.totalorder %s19, 0
    %p166 = por %p164, %p165
    %p167 = scmp.ne.s32.totalorder %s155, %s156
    %p168 = scmp.eq.s32.totalorder %s20, 1
    %p169 = por %p167, %p168
    %p171 = scmp.ne.s32.totalorder %s156, %s170
    %p172 = scmp.eq.s32.totalorder %s20, 0
    %p173 = por %p171, %p172
    %s175 = sadd.s32 %s174, 1
    %p178 = scmp.eq.s32.totalorder %s14, 1
    %p179 = scmp.ne.s32.totalorder %s174, %s176
    %p180 = scmp.eq.s32.totalorder %s14, 0
    %p181 = por %p179, %p180
    %p182 = scmp.ne.s32.totalorder %s174, %s176
    %p183 = scmp.eq.s32.totalorder %s19, 1
    %p184 = por %p182, %p183
    %p185 = scmp.ne.s32.totalorder %s176, %s177
    %p186 = scmp.eq.s32.totalorder %s19, 0
    %p187 = por %p185, %p186
    %p188 = scmp.ne.s32.totalorder %s176, %s177
    %p189 = scmp.eq.s32.totalorder %s20, 1
    %p190 = por %p188, %p189
    %p192 = scmp.ne.s32.totalorder %s177, %s191
    %p193 = scmp.eq.s32.totalorder %s20, 0
    %p194 = por %p192, %p193
    %s195 = ssub.s32 %s14, %s21
    %p196 = scmp.eq.s32.totalorder %s195, 0
    %s198 = sadd.s32 %s197, 1
    %s199 = scalar_select %p196, %s197, %s198
    %p202 = pneg %p196
    %p203 = scmp.eq.s32.totalorder %s14, 1
    %p204 = por %p202, %p203
    %p205 = scmp.ne.s32.totalorder %s197, %s200
    %p206 = scmp.eq.s32.totalorder %s14, 0
    %p207 = por %p205, %p206
    %p208 = scmp.ne.s32.totalorder %s197, %s200
    %p209 = scmp.eq.s32.totalorder %s19, 1
    %p210 = por %p208, %p209
    %p211 = scmp.ne.s32.totalorder %s200, %s201
    %p212 = scmp.eq.s32.totalorder %s19, 0
    %p213 = por %p211, %p212
    %p214 = scmp.ne.s32.totalorder %s200, %s201
    %p215 = scmp.eq.s32.totalorder %s20, 1
    %p216 = por %p214, %p215
    %p218 = scmp.ne.s32.totalorder %s201, %s217
    %p219 = scmp.eq.s32.totalorder %s20, 0
    %p220 = por %p218, %p219
    %p221 = scmp.le.s32.totalorder 1, %s14
    %p222 = scmp.lt.s32.totalorder %s14, 3
    %p223 = pnand %p221, %p222
    %p224 = pneg %p223
    // Predicated region
    $region9: #{classifier_head_forward.1} parent=5 // pred_check
      _
    $region10: #{classifier_head_forward.1} parent=5 // pred_check_branch
      %226 = sbr.rel (%p223) target = $region12
    $region11: #{classifier_head_forward.1} parent=5 // pred_region
      %s227 = ssub.s32 %s14, 1
      // Predicated region
      $region13: #{classifier_head_forward.1} parent=11 // pred_check
        %p228 = pneg %p61
      $region14: #{classifier_head_forward.1} parent=11 // pred_check_branch
        %230 = sbr.rel (%p228) target = $region16
      $region15: #{classifier_head_forward.1} parent=11 // pred_region
        _
      $region16: #{classifier_head_forward.1} parent=11 // pred_fallthru
        _
      // Predicated region
      $region17: #{classifier_head_forward.1} parent=11 // pred_check
        %p231 = pneg %p82
      $region18: #{classifier_head_forward.1} parent=11 // pred_check_branch
        %233 = sbr.rel (%p231) target = $region20
      $region19: #{classifier_head_forward.1} parent=11 // pred_region
        _
      $region20: #{classifier_head_forward.1} parent=11 // pred_fallthru
        _
      // Predicated region
      $region21: #{classifier_head_forward.1} parent=11 // pred_check
        %p234 = pneg %p103
      $region22: #{classifier_head_forward.1} parent=11 // pred_check_branch
        %236 = sbr.rel (%p234) target = $region24
      $region23: #{classifier_head_forward.1} parent=11 // pred_region
        _
      $region24: #{classifier_head_forward.1} parent=11 // pred_fallthru
        _
      // Predicated region
      $region25: #{classifier_head_forward.1} parent=11 // pred_check
        %p237 = pneg %p124
      $region26: #{classifier_head_forward.1} parent=11 // pred_check_branch
        %239 = sbr.rel (%p237) target = $region28
      $region27: #{classifier_head_forward.1} parent=11 // pred_region
        _
      $region28: #{classifier_head_forward.1} parent=11 // pred_fallthru
        _
      // Predicated region
      $region29: #{classifier_head_forward.1} parent=11 // pred_check
        %p240 = pneg %p145
      $region30: #{classifier_head_forward.1} parent=11 // pred_check_branch
        %242 = sbr.rel (%p240) target = $region32
      $region31: #{classifier_head_forward.1} parent=11 // pred_region
        _
      $region32: #{classifier_head_forward.1} parent=11 // pred_fallthru
        _
      // Predicated region
      $region33: #{classifier_head_forward.1} parent=11 // pred_check
        %p243 = pneg %p166
      $region34: #{classifier_head_forward.1} parent=11 // pred_check_branch
        %245 = sbr.rel (%p243) target = $region36
      $region35: #{classifier_head_forward.1} parent=11 // pred_region
        _
      $region36: #{classifier_head_forward.1} parent=11 // pred_fallthru
        _
      // Predicated region
      $region37: #{classifier_head_forward.1} parent=11 // pred_check
        %p246 = pneg %p187
      $region38: #{classifier_head_forward.1} parent=11 // pred_check_branch
        %248 = sbr.rel (%p246) target = $region40
      $region39: #{classifier_head_forward.1} parent=11 // pred_region
        _
      $region40: #{classifier_head_forward.1} parent=11 // pred_fallthru
        _
    $region12: #{classifier_head_forward.1} parent=5 // pred_fallthru
      _
    %p249 = scmp.lt.s32.totalorder %s14, 2
    // Predicated region
    $region41: #{classifier_head_forward.1} parent=5 // pred_check
      %p250 = pneg %p249
    $region42: #{classifier_head_forward.1} parent=5 // pred_check_branch
      %252 = sbr.rel (%p250) target = $region44
    $region43: #{classifier_head_forward.1} parent=5 // pred_region
      // Predicated region
      $region45: #{classifier_head_forward.1} parent=43 // pred_check
        %p253 = pneg %p34
      $region46: #{classifier_head_forward.1} parent=43 // pred_check_branch
        %255 = sbr.rel (%p253) target = $region48
      $region47: #{classifier_head_forward.1} parent=43 // pred_region
        %p256 = scmp.lt.s32.totalorder %s14, 1
        %s257 = scalar_select %p256, %s14, 1
        %s258 = smul.addr %s257, 8
        %s259 = smul.addr %s258, 8
        %s260 = scalar_lea.vmem %s0, %s259
      $region48: #{classifier_head_forward.1} parent=43 // pred_fallthru
        _
    $region44: #{classifier_head_forward.1} parent=5 // pred_fallthru
      _
    %p261 = scmp.le.s32.totalorder 1, %s14
    %p262 = scmp.lt.s32.totalorder %s14, 3
    %p263 = pnand %p261, %p262
    %p264 = pneg %p263
    // Predicated region
    $region49: #{classifier_head_forward.1} parent=5 // pred_check
      _
    $region50: #{classifier_head_forward.1} parent=5 // pred_check_branch
      %266 = sbr.rel (%p263) target = $region52
    $region51: #{classifier_head_forward.1} parent=5 // pred_region
      %s267 = ssub.s32 %s14, 1
      %p268 = scmp.lt.s32.totalorder %s19, 1
      %s269 = scalar_select %p268, %s19, 1
      %s270 = smul.addr %s269, 8
      %s271 = smul.addr %s270, 8
      %s272 = scalar_lea.vmem %s0, %s271
      %p273 = pneg %p40
      %p274 = pneg %p37
      %p275 = pneg %p61
      %p276 = pneg %p58
      %p277 = pneg %p82
      %p278 = pneg %p79
      %p279 = pneg %p103
      %p280 = pneg %p100
      %p281 = pneg %p124
      %p282 = pneg %p121
      %p283 = pneg %p145
      %p284 = pneg %p142
      %p285 = pneg %p166
      %p286 = pneg %p163
      %p287 = pneg %p187
      %p288 = pneg %p184
      %p289 = pneg %p213
      %p290 = pneg %p210
      %p291 = scmp.lt.s32.totalorder %s19, 1
      %s292 = scalar_select %p291, %s19, 1
      %s293 = smul.addr %s292, 8
      %s294 = smul.addr %s293, 8
      %s295 = scalar_lea.vmem %s8, %s294
      %p296 = scmp.lt.s32.totalorder %s19, 1
      %s297 = scalar_select %p296, %s19, 1
      %s298 = smul.addr %s297, 8
      %s299 = smul.addr %s298, 8
      %s300 = scalar_lea.vmem %s0, %s299
      %p301 = scmp.lt.s32.totalorder %s19, 1
      %s302 = scalar_select %p301, %s19, 1
      %s303 = smul.addr %s302, 8
      %s304 = smul.addr %s303, 8
      %s305 = scalar_lea.vmem %s8, %s304
      %v306 = vld [vmem:[%s1] sm:$0xff]
      %v307 = vld [vmem:[%s1 + $0x8] sm:$0xff]
      %v308 = vld [vmem:[%s1 + $0x10] sm:$0xff]
      %v309 = vld [vmem:[%s1 + $0x18] sm:$0xff]
      %v310 = vld [vmem:[%s1 + $0x20] sm:$0xff]
      %v311 = vld [vmem:[%s1 + $0x28] sm:$0xff]
      %v312 = vld [vmem:[%s1 + $0x30] sm:$0xff]
      %v313 = vld [vmem:[%s1 + $0x38] sm:$0xff]
      %v314 = vld [vmem:[%s300] sm:$0xff]
      %v315 = vld [vmem:[%s300 + $0x8] sm:$0xff]
      %v316 = vld [vmem:[%s300 + $0x10] sm:$0xff]
      %v317 = vld [vmem:[%s300 + $0x18] sm:$0xff]
      %v318 = vld [vmem:[%s300 + $0x20] sm:$0xff]
      %v319 = vld [vmem:[%s300 + $0x28] sm:$0xff]
      %v320 = vld [vmem:[%s300 + $0x30] sm:$0xff]
      %v321 = vld [vmem:[%s300 + $0x38] sm:$0xff]
      %vm330 = vcmask 1046528
      %v331 = vrot.slane 0.0, 1
      %v332 = vrot.slane %v314, 1
      %v333 = vsel %vm330, %v331, %v332
      %v334 = vrot.slane %v315, 1
      %v335 = vsel %vm330, %v332, %v334
      %v336 = vrot.slane %v316, 1
      %v337 = vsel %vm330, %v334, %v336
      %v338 = vrot.slane %v317, 1
      %v339 = vsel %vm330, %v336, %v338
      %v340 = vrot.slane %v318, 1
      %v341 = vsel %vm330, %v338, %v340
      %v342 = vrot.slane %v319, 1
      %v343 = vsel %vm330, %v340, %v342
      %v344 = vrot.slane %v320, 1
      %v345 = vsel %vm330, %v342, %v344
      %346 = vrot.lane.b32.xlu0 %v331, 8
      %v347 = vpop.permute.xlu0 %346
      %348 = vrot.lane.b32.xlu0 %v333, 8
      %v349 = vpop.permute.xlu0 %348
      %350 = vrot.lane.b32.xlu0 %v335, 8
      %v351 = vpop.permute.xlu0 %350
      %352 = vrot.lane.b32.xlu0 %v337, 8
      %v353 = vpop.permute.xlu0 %352
      %354 = vrot.lane.b32.xlu0 %v339, 8
      %v355 = vpop.permute.xlu0 %354
      %356 = vrot.lane.b32.xlu0 %v341, 8
      %v357 = vpop.permute.xlu0 %356
      %358 = vrot.lane.b32.xlu0 %v343, 8
      %v359 = vpop.permute.xlu0 %358
      %360 = vrot.lane.b32.xlu0 %v345, 8
      %v361 = vpop.permute.xlu0 %360
      %362 = vrot.lane.b32.xlu0 %v344, 8
      %v363 = vpop.permute.xlu0 %362
      %vm374 = vcmask 1045504
      %v375 = vrot.slane 0.0, 2
      %v376 = vrot.slane %v314, 2
      %v377 = vsel %vm374, %v375, %v376
      %v378 = vrot.slane %v315, 2
      %v379 = vsel %vm374, %v376, %v378
      %v380 = vrot.slane %v316, 2
      %v381 = vsel %vm374, %v378, %v380
      %v382 = vrot.slane %v317, 2
      %v383 = vsel %vm374, %v380, %v382
      %v384 = vrot.slane %v318, 2
      %v385 = vsel %vm374, %v382, %v384
      %v386 = vrot.slane %v319, 2
      %v387 = vsel %vm374, %v384, %v386
      %v388 = vrot.slane %v320, 2
      %v389 = vsel %vm374, %v386, %v388
      %v390 = vrot.slane %v321, 2
      %v391 = vsel %vm374, %v388, %v390
      %392 = vrot.lane.b32.xlu0 %v375, 16
      %v393 = vpop.permute.xlu0 %392
      %394 = vrot.lane.b32.xlu0 %v377, 16
      %v395 = vpop.permute.xlu0 %394
      %396 = vrot.lane.b32.xlu0 %v379, 16
      %v397 = vpop.permute.xlu0 %396
      %398 = vrot.lane.b32.xlu0 %v381, 16
      %v399 = vpop.permute.xlu0 %398
      %400 = vrot.lane.b32.xlu0 %v383, 16
      %v401 = vpop.permute.xlu0 %400
      %402 = vrot.lane.b32.xlu0 %v385, 16
      %v403 = vpop.permute.xlu0 %402
      %404 = vrot.lane.b32.xlu0 %v387, 16
      %v405 = vpop.permute.xlu0 %404
      %406 = vrot.lane.b32.xlu0 %v389, 16
      %v407 = vpop.permute.xlu0 %406
      %408 = vrot.lane.b32.xlu0 %v391, 16
      %v409 = vpop.permute.xlu0 %408
      %419 = vrot.lane.b32.xlu0 0.0, 24
      %v420 = vpop.permute.xlu0 %419
      %421 = vrot.lane.b32.xlu0 %v314, 24
      %v422 = vpop.permute.xlu0 %421
      %423 = vrot.lane.b32.xlu0 %v315, 24
      %v424 = vpop.permute.xlu0 %423
      %425 = vrot.lane.b32.xlu0 %v316, 24
      %v426 = vpop.permute.xlu0 %425
      %427 = vrot.lane.b32.xlu0 %v317, 24
      %v428 = vpop.permute.xlu0 %427
      %429 = vrot.lane.b32.xlu0 %v318, 24
      %v430 = vpop.permute.xlu0 %429
      %431 = vrot.lane.b32.xlu0 %v319, 24
      %v432 = vpop.permute.xlu0 %431
      %433 = vrot.lane.b32.xlu0 %v320, 24
      %v434 = vpop.permute.xlu0 %433
      %435 = vrot.lane.b32.xlu0 %v321, 24
      %v436 = vpop.permute.xlu0 %435
      %v446 = vrot.slane %v321, 1
      %v447 = vsel %vm330, %v344, %v446
      %448 = vrot.lane.b32.xlu0 %v332, 32
      %v449 = vpop.permute.xlu0 %448
      %450 = vrot.lane.b32.xlu0 %v335, 32
      %v451 = vpop.permute.xlu0 %450
      %452 = vrot.lane.b32.xlu0 %v337, 32
      %v453 = vpop.permute.xlu0 %452
      %454 = vrot.lane.b32.xlu0 %v339, 32
      %v455 = vpop.permute.xlu0 %454
      %456 = vrot.lane.b32.xlu0 %v341, 32
      %v457 = vpop.permute.xlu0 %456
      %458 = vrot.lane.b32.xlu0 %v343, 32
      %v459 = vpop.permute.xlu0 %458
      %460 = vrot.lane.b32.xlu0 %v345, 32
      %v461 = vpop.permute.xlu0 %460
      %462 = vrot.lane.b32.xlu0 %v447, 32
      %v463 = vpop.permute.xlu0 %462
      %464 = vrot.lane.b32.xlu0 %v446, 32
      %v465 = vpop.permute.xlu0 %464
      %v475 = vsel %vm374, %v390, %v375
      %476 = vrot.lane.b32.xlu0 %v376, 40
      %v477 = vpop.permute.xlu0 %476
      %478 = vrot.lane.b32.xlu0 %v379, 40
      %v479 = vpop.permute.xlu0 %478
      %480 = vrot.lane.b32.xlu0 %v381, 40
      %v481 = vpop.permute.xlu0 %480
      %482 = vrot.lane.b32.xlu0 %v383, 40
      %v483 = vpop.permute.xlu0 %482
      %484 = vrot.lane.b32.xlu0 %v385, 40
      %v485 = vpop.permute.xlu0 %484
      %486 = vrot.lane.b32.xlu0 %v387, 40
      %v487 = vpop.permute.xlu0 %486
      %488 = vrot.lane.b32.xlu0 %v389, 40
      %v489 = vpop.permute.xlu0 %488
      %490 = vrot.lane.b32.xlu0 %v391, 40
      %v491 = vpop.permute.xlu0 %490
      %492 = vrot.lane.b32.xlu0 %v475, 40
      %v493 = vpop.permute.xlu0 %492
      %503 = vrot.lane.b32.xlu0 %v314, 48
      %v504 = vpop.permute.xlu0 %503
      %505 = vrot.lane.b32.xlu0 %v315, 48
      %v506 = vpop.permute.xlu0 %505
      %507 = vrot.lane.b32.xlu0 %v316, 48
      %v508 = vpop.permute.xlu0 %507
      %509 = vrot.lane.b32.xlu0 %v317, 48
      %v510 = vpop.permute.xlu0 %509
      %511 = vrot.lane.b32.xlu0 %v318, 48
      %v512 = vpop.permute.xlu0 %511
      %513 = vrot.lane.b32.xlu0 %v319, 48
      %v514 = vpop.permute.xlu0 %513
      %515 = vrot.lane.b32.xlu0 %v320, 48
      %v516 = vpop.permute.xlu0 %515
      %517 = vrot.lane.b32.xlu0 %v321, 48
      %v518 = vpop.permute.xlu0 %517
      %519 = vrot.lane.b32.xlu0 0.0, 48
      %v520 = vpop.permute.xlu0 %519
      %v530 = vsel %vm330, %v446, %v331
      %531 = vrot.lane.b32.xlu0 %v334, 56
      %v532 = vpop.permute.xlu0 %531
      %533 = vrot.lane.b32.xlu0 %v337, 56
      %v534 = vpop.permute.xlu0 %533
      %535 = vrot.lane.b32.xlu0 %v339, 56
      %v536 = vpop.permute.xlu0 %535
      %537 = vrot.lane.b32.xlu0 %v341, 56
      %v538 = vpop.permute.xlu0 %537
      %539 = vrot.lane.b32.xlu0 %v343, 56
      %v540 = vpop.permute.xlu0 %539
      %541 = vrot.lane.b32.xlu0 %v345, 56
      %v542 = vpop.permute.xlu0 %541
      %543 = vrot.lane.b32.xlu0 %v447, 56
      %v544 = vpop.permute.xlu0 %543
      %545 = vrot.lane.b32.xlu0 %v530, 56
      %v546 = vpop.permute.xlu0 %545
      %547 = vrot.lane.b32.xlu0 %v331, 56
      %v548 = vpop.permute.xlu0 %547
      %v558 = vsel %vm374, %v375, %v375
      %559 = vrot.lane.b32.xlu0 %v378, 64
      %v560 = vpop.permute.xlu0 %559
      %561 = vrot.lane.b32.xlu0 %v381, 64
      %v562 = vpop.permute.xlu0 %561
      %563 = vrot.lane.b32.xlu0 %v383, 64
      %v564 = vpop.permute.xlu0 %563
      %565 = vrot.lane.b32.xlu0 %v385, 64
      %v566 = vpop.permute.xlu0 %565
      %567 = vrot.lane.b32.xlu0 %v387, 64
      %v568 = vpop.permute.xlu0 %567
      %569 = vrot.lane.b32.xlu0 %v389, 64
      %v570 = vpop.permute.xlu0 %569
      %571 = vrot.lane.b32.xlu0 %v391, 64
      %v572 = vpop.permute.xlu0 %571
      %573 = vrot.lane.b32.xlu0 %v475, 64
      %v574 = vpop.permute.xlu0 %573
      %575 = vrot.lane.b32.xlu0 %v558, 64
      %v576 = vpop.permute.xlu0 %575
      %vm586 = vcmask 64512
      %v587 = vsel %vm586, 0.0, %v347
      %v588 = vsel %vm586, 0.0, %v349
      %v589 = vsel %vm586, %v314, %v351
      %v590 = vsel %vm586, %v315, %v353
      %v591 = vsel %vm586, %v316, %v355
      %v592 = vsel %vm586, %v317, %v357
      %v593 = vsel %vm586, %v318, %v359
      %v594 = vsel %vm586, %v319, %v361
      %v595 = vsel %vm586, %v320, %v363
      %vm596 = vcmask 130048
      %v597 = vsel %vm596, %v587, %v393
      %v598 = vsel %vm596, %v588, %v395
      %v599 = vsel %vm596, %v589, %v397
      %v600 = vsel %vm596, %v590, %v399
      %v601 = vsel %vm596, %v591, %v401
      %v602 = vsel %vm596, %v592, %v403
      %v603 = vsel %vm596, %v593, %v405
      %v604 = vsel %vm596, %v594, %v407
      %v605 = vsel %vm596, %v595, %v409
      %vm606 = vcmask 195584
      %v607 = vsel %vm606, %v597, %v420
      %v608 = vsel %vm606, %v598, %v422
      %v609 = vsel %vm606, %v599, %v424
      %v610 = vsel %vm606, %v600, %v426
      %v611 = vsel %vm606, %v601, %v428
      %v612 = vsel %vm606, %v602, %v430
      %v613 = vsel %vm606, %v603, %v432
      %v614 = vsel %vm606, %v604, %v434
      %v615 = vsel %vm606, %v605, %v436
      %vm616 = vcmask 261120
      %v617 = vsel %vm616, %v607, %v449
      %v618 = vsel %vm616, %v608, %v451
      %v619 = vsel %vm616, %v609, %v453
      %v620 = vsel %vm616, %v610, %v455
      %v621 = vsel %vm616, %v611, %v457
      %v622 = vsel %vm616, %v612, %v459
      %v623 = vsel %vm616, %v613, %v461
      %v624 = vsel %vm616, %v614, %v463
      %v625 = vsel %vm616, %v615, %v465
      %vm626 = vcmask 326656
      %v627 = vsel %vm626, %v617, %v477
      %v628 = vsel %vm626, %v618, %v479
      %v629 = vsel %vm626, %v619, %v481
      %v630 = vsel %vm626, %v620, %v483
      %v631 = vsel %vm626, %v621, %v485
      %v632 = vsel %vm626, %v622, %v487
      %v633 = vsel %vm626, %v623, %v489
      %v634 = vsel %vm626, %v624, %v491
      %v635 = vsel %vm626, %v625, %v493
      %vm636 = vcmask 392192
      %v637 = vsel %vm636, %v627, %v504
      %v638 = vsel %vm636, %v628, %v506
      %v639 = vsel %vm636, %v629, %v508
      %v640 = vsel %vm636, %v630, %v510
      %v641 = vsel %vm636, %v631, %v512
      %v642 = vsel %vm636, %v632, %v514
      %v643 = vsel %vm636, %v633, %v516
      %v644 = vsel %vm636, %v634, %v518
      %v645 = vsel %vm636, %v635, %v520
      %vm646 = vcmask 457728
      %v647 = vsel %vm646, %v637, %v532
      %v648 = vsel %vm646, %v638, %v534
      %v649 = vsel %vm646, %v639, %v536
      %v650 = vsel %vm646, %v640, %v538
      %v651 = vsel %vm646, %v641, %v540
      %v652 = vsel %vm646, %v642, %v542
      %v653 = vsel %vm646, %v643, %v544
      %v654 = vsel %vm646, %v644, %v546
      %v655 = vsel %vm646, %v645, %v548
      %vm656 = vcmask 523264
      %v657 = vsel %vm656, %v647, %v560
      %v658 = vsel %vm656, %v648, %v562
      %v659 = vsel %vm656, %v649, %v564
      %v660 = vsel %vm656, %v650, %v566
      %v661 = vsel %vm656, %v651, %v568
      %v662 = vsel %vm656, %v652, %v570
      %v663 = vsel %vm656, %v653, %v572
      %v664 = vsel %vm656, %v654, %v574
      %v665 = vsel %vm656, %v655, %v576
      %v674 = vrot.slane %v306, 1
      %v675 = vrot.slane %v307, 1
      %v676 = vsel %vm330, %v674, %v675
      %v677 = vrot.slane %v308, 1
      %v678 = vsel %vm330, %v675, %v677
      %v679 = vrot.slane %v309, 1
      %v680 = vsel %vm330, %v677, %v679
      %v681 = vrot.slane %v310, 1
      %v682 = vsel %vm330, %v679, %v681
      %v683 = vrot.slane %v311, 1
      %v684 = vsel %vm330, %v681, %v683
      %v685 = vrot.slane %v312, 1
      %v686 = vsel %vm330, %v683, %v685
      %v687 = vrot.slane %v313, 1
      %v688 = vsel %vm330, %v685, %v687
      %v698 = vmul.f32 %v657, %v674
      %v699 = vmul.f32 %v658, %v676
      %v700 = vmul.f32 %v659, %v678
      %v701 = vmul.f32 %v660, %v680
      %v702 = vmul.f32 %v661, %v682
      %v703 = vmul.f32 %v662, %v684
      %v704 = vmul.f32 %v663, %v686
      %v705 = vmul.f32 %v664, %v688
      %v706 = vmul.f32 %v665, %v687
      %v707 = vld [vmem:[%s2] sm:$0xff]
      %v708 = vld [vmem:[%s2 + $0x8] sm:$0xff]
      %v709 = vld [vmem:[%s2 + $0x10] sm:$0xff]
      %v710 = vld [vmem:[%s2 + $0x18] sm:$0xff]
      %v711 = vld [vmem:[%s2 + $0x20] sm:$0xff]
      %v712 = vld [vmem:[%s2 + $0x28] sm:$0xff]
      %v713 = vld [vmem:[%s2 + $0x30] sm:$0xff]
      %v714 = vld [vmem:[%s2 + $0x38] sm:$0xff]
      %v715 = vld [vmem:[%s2 + $0x40] sm:$0xff]
      %v716 = vld [vmem:[%s3] sm:$0x1]
      %v718 = vlaneseq
      %v719 = vshrl.u32 %v718, 7
      %v720 = vsub.s32 0, %v719
      %v721 = vrot.slane %v716, %v720
      %vm732 = vcmask 1040384
      %v733 = vrot.slane %v698, 7
      %v734 = vrot.slane %v699, 7
      %v735 = vsel %vm732, %v733, %v734
      %v736 = vrot.slane %v700, 7
      %v737 = vsel %vm732, %v734, %v736
      %v738 = vrot.slane %v701, 7
      %v739 = vsel %vm732, %v736, %v738
      %v740 = vrot.slane %v702, 7
      %v741 = vsel %vm732, %v738, %v740
      %v742 = vrot.slane %v703, 7
      %v743 = vsel %vm732, %v740, %v742
      %v744 = vrot.slane %v704, 7
      %v745 = vsel %vm732, %v742, %v744
      %v746 = vrot.slane %v705, 7
      %v747 = vsel %vm732, %v744, %v746
      %v748 = vrot.slane %v706, 7
      %v749 = vsel %vm732, %v746, %v748
      %vm750 = vcmask 588800
      %v751 = vsel %vm750, %v735, 0
      %v753 = vsel %vm750, %v737, 0
      %v755 = vsel %vm750, %v739, 0
      %v757 = vsel %vm750, %v741, 0
      %v759 = vsel %vm750, %v743, 0
      %v761 = vsel %vm750, %v745, 0
      %v763 = vsel %vm750, %v747, 0
      %v765 = vsel %vm750, %v749, 0
      %767 = vmatprep.subr.mxu0 0.0
      %768 = vmatpush1.msra.mxu0 %v707
      %769 = vmatprep.subr.mxu0 0.0
      %770 = vmatpush1.msra.mxu0 %v708
      %771 = vmatprep.subr.mxu0 0.0
      %772 = vmatpush1.msra.mxu0 %v709
      %773 = vmatprep.subr.mxu0 0.0
      %774 = vmatpush1.msra.mxu0 %v710
      %775 = vmatprep.subr.mxu0 0.0
      %776 = vmatpush1.msra.mxu0 %v711
      %777 = vmatprep.subr.mxu0 0.0
      %778 = vmatpush1.msra.mxu0 %v712
      %779 = vmatprep.subr.mxu0 0.0
      %780 = vmatpush1.msra.mxu0 %v713
      %781 = vmatprep.subr.mxu0 0.0
      %782 = vmatpush1.msra.mxu0 %v714
      %783 = vmatprep.subr.mxu0 0.0
      %784 = vmatpush1.msra.mxu0 %v715
      %785 = vmatprep.subr.mxu0 0.0
      %786 = vmatpush1.msra.mxu0 0.0
      %787 = vmatprep.subr.mxu0 0.0
      %788 = vmatpush1.msra.mxu0 0.0
      %789 = vmatprep.subr.mxu0 0.0
      %790 = vmatpush1.msra.mxu0 0.0
      %791 = vmatprep.subr.mxu0 0.0
      %792 = vmatpush1.msra.mxu0 0.0
      %793 = vmatprep.subr.mxu0 0.0
      %794 = vmatpush1.msra.mxu0 0.0
      %795 = vmatprep.subr.mxu0 0.0
      %796 = vmatpush1.msra.mxu0 0.0
      %797 = vmatprep.subr.mxu0 0.0
      %798 = vmatpush1.msra.mxu0 0.0
      %799 = vmatprep.subr.mxu0 0.0
      %800 = vmatpush1.msra.mxu0 0.0
      %801 = vmatprep.subr.mxu0 0.0
      %802 = vmatpush1.msra.mxu0 0.0
      %803 = vmatprep.subr.mxu0 0.0
      %804 = vmatpush1.msra.mxu0 0.0
      %805 = vmatprep.subr.mxu0 0.0
      %806 = vmatpush1.msra.mxu0 0.0
      %807 = vmatprep.subr.mxu0 0.0
      %808 = vmatpush1.msra.mxu0 0.0
      %809 = vmatprep.subr.mxu0 0.0
      %810 = vmatpush1.msra.mxu0 0.0
      %811 = vmatprep.subr.mxu0 0.0
      %812 = vmatpush1.msra.mxu0 0.0
      %813 = vmatprep.subr.mxu0 0.0
      %814 = vmatpush1.msra.mxu0 0.0
      %815 = vmatprep.subr.mxu0 0.0
      %816 = vmatpush1.msra.mxu0 0.0
      %817 = vmatprep.subr.mxu0 0.0
      %818 = vmatpush1.msra.mxu0 0.0
      %819 = vmatprep.subr.mxu0 0.0
      %820 = vmatpush1.msra.mxu0 0.0
      %821 = vmatprep.subr.mxu0 0.0
      %822 = vmatpush1.msra.mxu0 0.0
      %823 = vmatprep.subr.mxu0 0.0
      %824 = vmatpush1.msra.mxu0 0.0
      %825 = vmatprep.subr.mxu0 0.0
      %826 = vmatpush1.msra.mxu0 0.0
      %827 = vmatprep.subr.mxu0 0.0
      %828 = vmatpush1.msra.mxu0 0.0
      %829 = vmatprep.subr.mxu0 0.0
      %830 = vmatpush1.msra.mxu0 0.0
      %831 = vmatprep.mubr.f32.mxu0 0.0
      %832 = vmatmul.mubr.f32.gmra.mrb[0].mxu0 %v751
      %v833 = vpop.f32.mrb[0].mxu0
      %v834 = vadd.f32 %v721, %v833
      %v835 = vpop.f32.mrb[0].mxu0
      %836 = vmatprep.mubr.f32.mxu0 0.0
      %837 = vmatmul.mubr.f32.gmra.mrb[0].mxu0 %v753
      %v838 = vpop.f32.mrb[0].mxu0
      %v839 = vadd.f32 %v721, %v838
      %v840 = vpop.f32.mrb[0].mxu0
      %841 = vmatprep.mubr.f32.mxu0 0.0
      %842 = vmatmul.mubr.f32.gmra.mrb[0].mxu0 %v755
      %v843 = vpop.f32.mrb[0].mxu0
      %v844 = vadd.f32 %v721, %v843
      %v845 = vpop.f32.mrb[0].mxu0
      %846 = vmatprep.mubr.f32.mxu0 0.0
      %847 = vmatmul.mubr.f32.gmra.mrb[0].mxu0 %v757
      %v848 = vpop.f32.mrb[0].mxu0
      %v849 = vadd.f32 %v721, %v848
      %v850 = vpop.f32.mrb[0].mxu0
      %851 = vmatprep.mubr.f32.mxu0 0.0
      %852 = vmatmul.mubr.f32.gmra.mrb[0].mxu0 %v759
      %v853 = vpop.f32.mrb[0].mxu0
      %v854 = vadd.f32 %v721, %v853
      %v855 = vpop.f32.mrb[0].mxu0
      %856 = vmatprep.mubr.f32.mxu0 0.0
      %857 = vmatmul.mubr.f32.gmra.mrb[0].mxu0 %v761
      %v858 = vpop.f32.mrb[0].mxu0
      %v859 = vadd.f32 %v721, %v858
      %v860 = vpop.f32.mrb[0].mxu0
      %861 = vmatprep.mubr.f32.mxu0 0.0
      %862 = vmatmul.mubr.f32.gmra.mrb[0].mxu0 %v763
      %v863 = vpop.f32.mrb[0].mxu0
      %v864 = vadd.f32 %v721, %v863
      %v865 = vpop.f32.mrb[0].mxu0
      %866 = vmatprep.mubr.f32.mxu0 0.0
      %867 = vmatmul.mubr.f32.gmra.mrb[0].mxu0 %v765
      %v868 = vpop.f32.mrb[0].mxu0
      %v869 = vadd.f32 %v721, %v868
      %v870 = vpop.f32.mrb[0].mxu0
      %871 = vdwg.mxu0
      %v872 = vmax.f32 %v834, 0.0
      %v873 = vmax.f32 %v839, 0.0
      %v874 = vmax.f32 %v844, 0.0
      %v875 = vmax.f32 %v849, 0.0
      %v876 = vmax.f32 %v854, 0.0
      %v877 = vmax.f32 %v859, 0.0
      %v878 = vmax.f32 %v864, 0.0
      %v879 = vmax.f32 %v869, 0.0
      %v887 = vrot.slane %v872, 1
      %v888 = vsel %vm330, %v331, %v887
      %v889 = vrot.slane %v873, 1
      %v890 = vsel %vm330, %v887, %v889
      %v891 = vrot.slane %v874, 1
      %v892 = vsel %vm330, %v889, %v891
      %v893 = vrot.slane %v875, 1
      %v894 = vsel %vm330, %v891, %v893
      %v895 = vrot.slane %v876, 1
      %v896 = vsel %vm330, %v893, %v895
      %v897 = vrot.slane %v877, 1
      %v898 = vsel %vm330, %v895, %v897
      %v899 = vrot.slane %v878, 1
      %v900 = vsel %vm330, %v897, %v899
      %901 = vrot.lane.b32.xlu0 %v888, 8
      %v902 = vpop.permute.xlu0 %901
      %903 = vrot.lane.b32.xlu0 %v890, 8
      %v904 = vpop.permute.xlu0 %903
      %905 = vrot.lane.b32.xlu0 %v892, 8
      %v906 = vpop.permute.xlu0 %905
      %907 = vrot.lane.b32.xlu0 %v894, 8
      %v908 = vpop.permute.xlu0 %907
      %909 = vrot.lane.b32.xlu0 %v896, 8
      %v910 = vpop.permute.xlu0 %909
      %911 = vrot.lane.b32.xlu0 %v898, 8
      %v912 = vpop.permute.xlu0 %911
      %913 = vrot.lane.b32.xlu0 %v900, 8
      %v914 = vpop.permute.xlu0 %913
      %915 = vrot.lane.b32.xlu0 %v899, 8
      %v916 = vpop.permute.xlu0 %915
      %v926 = vrot.slane %v872, 2
      %v927 = vsel %vm374, %v375, %v926
      %v928 = vrot.slane %v873, 2
      %v929 = vsel %vm374, %v926, %v928
      %v930 = vrot.slane %v874, 2
      %v931 = vsel %vm374, %v928, %v930
      %v932 = vrot.slane %v875, 2
      %v933 = vsel %vm374, %v930, %v932
      %v934 = vrot.slane %v876, 2
      %v935 = vsel %vm374, %v932, %v934
      %v936 = vrot.slane %v877, 2
      %v937 = vsel %vm374, %v934, %v936
      %v938 = vrot.slane %v878, 2
      %v939 = vsel %vm374, %v936, %v938
      %v940 = vrot.slane %v879, 2
      %v941 = vsel %vm374, %v938, %v940
      %942 = vrot.lane.b32.xlu0 %v927, 16
      %v943 = vpop.permute.xlu0 %942
      %944 = vrot.lane.b32.xlu0 %v929, 16
      %v945 = vpop.permute.xlu0 %944
      %946 = vrot.lane.b32.xlu0 %v931, 16
      %v947 = vpop.permute.xlu0 %946
      %948 = vrot.lane.b32.xlu0 %v933, 16
      %v949 = vpop.permute.xlu0 %948
      %950 = vrot.lane.b32.xlu0 %v935, 16
      %v951 = vpop.permute.xlu0 %950
      %952 = vrot.lane.b32.xlu0 %v937, 16
      %v953 = vpop.permute.xlu0 %952
      %954 = vrot.lane.b32.xlu0 %v939, 16
      %v955 = vpop.permute.xlu0 %954
      %956 = vrot.lane.b32.xlu0 %v941, 16
      %v957 = vpop.permute.xlu0 %956
      %966 = vrot.lane.b32.xlu0 %v872, 24
      %v967 = vpop.permute.xlu0 %966
      %968 = vrot.lane.b32.xlu0 %v873, 24
      %v969 = vpop.permute.xlu0 %968
      %970 = vrot.lane.b32.xlu0 %v874, 24
      %v971 = vpop.permute.xlu0 %970
      %972 = vrot.lane.b32.xlu0 %v875, 24
      %v973 = vpop.permute.xlu0 %972
      %974 = vrot.lane.b32.xlu0 %v876, 24
      %v975 = vpop.permute.xlu0 %974
      %976 = vrot.lane.b32.xlu0 %v877, 24
      %v977 = vpop.permute.xlu0 %976
      %978 = vrot.lane.b32.xlu0 %v878, 24
      %v979 = vpop.permute.xlu0 %978
      %980 = vrot.lane.b32.xlu0 %v879, 24
      %v981 = vpop.permute.xlu0 %980
      %v990 = vrot.slane %v879, 1
      %v991 = vsel %vm330, %v899, %v990
      %992 = vrot.lane.b32.xlu0 %v887, 32
      %v993 = vpop.permute.xlu0 %992
      %994 = vrot.lane.b32.xlu0 %v890, 32
      %v995 = vpop.permute.xlu0 %994
      %996 = vrot.lane.b32.xlu0 %v892, 32
      %v997 = vpop.permute.xlu0 %996
      %998 = vrot.lane.b32.xlu0 %v894, 32
      %v999 = vpop.permute.xlu0 %998
      %1000 = vrot.lane.b32.xlu0 %v896, 32
      %v1001 = vpop.permute.xlu0 %1000
      %1002 = vrot.lane.b32.xlu0 %v898, 32
      %v1003 = vpop.permute.xlu0 %1002
      %1004 = vrot.lane.b32.xlu0 %v900, 32
      %v1005 = vpop.permute.xlu0 %1004
      %1006 = vrot.lane.b32.xlu0 %v991, 32
      %v1007 = vpop.permute.xlu0 %1006
      %1008 = vrot.lane.b32.xlu0 %v990, 32
      %v1009 = vpop.permute.xlu0 %1008
      %v1019 = vsel %vm374, %v940, %v375
      %1020 = vrot.lane.b32.xlu0 %v926, 40
      %v1021 = vpop.permute.xlu0 %1020
      %1022 = vrot.lane.b32.xlu0 %v929, 40
      %v1023 = vpop.permute.xlu0 %1022
      %1024 = vrot.lane.b32.xlu0 %v931, 40
      %v1025 = vpop.permute.xlu0 %1024
      %1026 = vrot.lane.b32.xlu0 %v933, 40
      %v1027 = vpop.permute.xlu0 %1026
      %1028 = vrot.lane.b32.xlu0 %v935, 40
      %v1029 = vpop.permute.xlu0 %1028
      %1030 = vrot.lane.b32.xlu0 %v937, 40
      %v1031 = vpop.permute.xlu0 %1030
      %1032 = vrot.lane.b32.xlu0 %v939, 40
      %v1033 = vpop.permute.xlu0 %1032
      %1034 = vrot.lane.b32.xlu0 %v941, 40
      %v1035 = vpop.permute.xlu0 %1034
      %1036 = vrot.lane.b32.xlu0 %v1019, 40
      %v1037 = vpop.permute.xlu0 %1036
      %1047 = vrot.lane.b32.xlu0 %v872, 48
      %v1048 = vpop.permute.xlu0 %1047
      %1049 = vrot.lane.b32.xlu0 %v873, 48
      %v1050 = vpop.permute.xlu0 %1049
      %1051 = vrot.lane.b32.xlu0 %v874, 48
      %v1052 = vpop.permute.xlu0 %1051
      %1053 = vrot.lane.b32.xlu0 %v875, 48
      %v1054 = vpop.permute.xlu0 %1053
      %1055 = vrot.lane.b32.xlu0 %v876, 48
      %v1056 = vpop.permute.xlu0 %1055
      %1057 = vrot.lane.b32.xlu0 %v877, 48
      %v1058 = vpop.permute.xlu0 %1057
      %1059 = vrot.lane.b32.xlu0 %v878, 48
      %v1060 = vpop.permute.xlu0 %1059
      %1061 = vrot.lane.b32.xlu0 %v879, 48
      %v1062 = vpop.permute.xlu0 %1061
      %v1071 = vsel %vm330, %v990, %v331
      %1072 = vrot.lane.b32.xlu0 %v889, 56
      %v1073 = vpop.permute.xlu0 %1072
      %1074 = vrot.lane.b32.xlu0 %v892, 56
      %v1075 = vpop.permute.xlu0 %1074
      %1076 = vrot.lane.b32.xlu0 %v894, 56
      %v1077 = vpop.permute.xlu0 %1076
      %1078 = vrot.lane.b32.xlu0 %v896, 56
      %v1079 = vpop.permute.xlu0 %1078
      %1080 = vrot.lane.b32.xlu0 %v898, 56
      %v1081 = vpop.permute.xlu0 %1080
      %1082 = vrot.lane.b32.xlu0 %v900, 56
      %v1083 = vpop.permute.xlu0 %1082
      %1084 = vrot.lane.b32.xlu0 %v991, 56
      %v1085 = vpop.permute.xlu0 %1084
      %1086 = vrot.lane.b32.xlu0 %v1071, 56
      %v1087 = vpop.permute.xlu0 %1086
      %1096 = vrot.lane.b32.xlu0 %v928, 64
      %v1097 = vpop.permute.xlu0 %1096
      %1098 = vrot.lane.b32.xlu0 %v931, 64
      %v1099 = vpop.permute.xlu0 %1098
      %1100 = vrot.lane.b32.xlu0 %v933, 64
      %v1101 = vpop.permute.xlu0 %1100
      %1102 = vrot.lane.b32.xlu0 %v935, 64
      %v1103 = vpop.permute.xlu0 %1102
      %1104 = vrot.lane.b32.xlu0 %v937, 64
      %v1105 = vpop.permute.xlu0 %1104
      %1106 = vrot.lane.b32.xlu0 %v939, 64
      %v1107 = vpop.permute.xlu0 %1106
      %1108 = vrot.lane.b32.xlu0 %v941, 64
      %v1109 = vpop.permute.xlu0 %1108
      %1110 = vrot.lane.b32.xlu0 %v1019, 64
      %v1111 = vpop.permute.xlu0 %1110
      %v1120 = vsel %vm586, 0.0, %v902
      %v1121 = vsel %vm586, %v872, %v904
      %v1122 = vsel %vm586, %v873, %v906
      %v1123 = vsel %vm586, %v874, %v908
      %v1124 = vsel %vm586, %v875, %v910
      %v1125 = vsel %vm586, %v876, %v912
      %v1126 = vsel %vm586, %v877, %v914
      %v1127 = vsel %vm586, %v878, %v916
      %v1128 = vsel %vm596, %v1120, %v943
      %v1129 = vsel %vm596, %v1121, %v945
      %v1130 = vsel %vm596, %v1122, %v947
      %v1131 = vsel %vm596, %v1123, %v949
      %v1132 = vsel %vm596, %v1124, %v951
      %v1133 = vsel %vm596, %v1125, %v953
      %v1134 = vsel %vm596, %v1126, %v955
      %v1135 = vsel %vm596, %v1127, %v957
      %v1136 = vsel %vm606, %v1128, %v967
      %v1137 = vsel %vm606, %v1129, %v969
      %v1138 = vsel %vm606, %v1130, %v971
      %v1139 = vsel %vm606, %v1131, %v973
      %v1140 = vsel %vm606, %v1132, %v975
      %v1141 = vsel %vm606, %v1133, %v977
      %v1142 = vsel %vm606, %v1134, %v979
      %v1143 = vsel %vm606, %v1135, %v981
      %v1144 = vsel %vm616, %v607, %v993
      %v1145 = vsel %vm616, %v1136, %v995
      %v1146 = vsel %vm616, %v1137, %v997
      %v1147 = vsel %vm616, %v1138, %v999
      %v1148 = vsel %vm616, %v1139, %v1001
      %v1149 = vsel %vm616, %v1140, %v1003
      %v1150 = vsel %vm616, %v1141, %v1005
      %v1151 = vsel %vm616, %v1142, %v1007
      %v1152 = vsel %vm616, %v1143, %v1009
      %v1153 = vsel %vm626, %v1144, %v1021
      %v1154 = vsel %vm626, %v1145, %v1023
      %v1155 = vsel %vm626, %v1146, %v1025
      %v1156 = vsel %vm626, %v1147, %v1027
      %v1157 = vsel %vm626, %v1148, %v1029
      %v1158 = vsel %vm626, %v1149, %v1031
      %v1159 = vsel %vm626, %v1150, %v1033
      %v1160 = vsel %vm626, %v1151, %v1035
      %v1161 = vsel %vm626, %v1152, %v1037
      %v1162 = vsel %vm636, %v1153, %v1048
      %v1163 = vsel %vm636, %v1154, %v1050
      %v1164 = vsel %vm636, %v1155, %v1052
      %v1165 = vsel %vm636, %v1156, %v1054
      %v1166 = vsel %vm636, %v1157, %v1056
      %v1167 = vsel %vm636, %v1158, %v1058
      %v1168 = vsel %vm636, %v1159, %v1060
      %v1169 = vsel %vm636, %v1160, %v1062
      %v1170 = vsel %vm636, %v1161, %v520
      %v1171 = vsel %vm646, %v1162, %v1073
      %v1172 = vsel %vm646, %v1163, %v1075
      %v1173 = vsel %vm646, %v1164, %v1077
      %v1174 = vsel %vm646, %v1165, %v1079
      %v1175 = vsel %vm646, %v1166, %v1081
      %v1176 = vsel %vm646, %v1167, %v1083
      %v1177 = vsel %vm646, %v1168, %v1085
      %v1178 = vsel %vm646, %v1169, %v1087
      %v1179 = vsel %vm646, %v1170, %v548
      %v1180 = vsel %vm656, %v1171, %v1097
      %v1181 = vsel %vm656, %v1172, %v1099
      %v1182 = vsel %vm656, %v1173, %v1101
      %v1183 = vsel %vm656, %v1174, %v1103
      %v1184 = vsel %vm656, %v1175, %v1105
      %v1185 = vsel %vm656, %v1176, %v1107
      %v1186 = vsel %vm656, %v1177, %v1109
      %v1187 = vsel %vm656, %v1178, %v1111
      %v1188 = vsel %vm656, %v1179, %v576
      %v1189 = vmul.f32 %v1180, %v674
      %v1190 = vmul.f32 %v1181, %v676
      %v1191 = vmul.f32 %v1182, %v678
      %v1192 = vmul.f32 %v1183, %v680
      %v1193 = vmul.f32 %v1184, %v682
      %v1194 = vmul.f32 %v1185, %v684
      %v1195 = vmul.f32 %v1186, %v686
      %v1196 = vmul.f32 %v1187, %v688
      %v1197 = vmul.f32 %v1188, %v687
      %v1198 = vld [vmem:[%s4] sm:$0xff]
      %v1199 = vld [vmem:[%s4 + $0x8] sm:$0xff]
      %v1200 = vld [vmem:[%s4 + $0x10] sm:$0xff]
      %v1201 = vld [vmem:[%s4 + $0x18] sm:$0xff]
      %v1202 = vld [vmem:[%s4 + $0x20] sm:$0xff]
      %v1203 = vld [vmem:[%s4 + $0x28] sm:$0xff]
      %v1204 = vld [vmem:[%s4 + $0x30] sm:$0xff]
      %v1205 = vld [vmem:[%s4 + $0x38] sm:$0xff]
      %v1206 = vld [vmem:[%s4 + $0x40] sm:$0xff]
      %v1207 = vld [vmem:[%s5] sm:$0x1]
      %v1209 = vlaneseq
      %v1210 = vshrl.u32 %v1209, 7
      %v1211 = vsub.s32 0, %v1210
      %v1212 = vrot.slane %v1207, %v1211
      %v1223 = vrot.slane %v1189, 7
      %v1224 = vrot.slane %v1190, 7
      %v1225 = vsel %vm732, %v1223, %v1224
      %v1226 = vrot.slane %v1191, 7
      %v1227 = vsel %vm732, %v1224, %v1226
      %v1228 = vrot.slane %v1192, 7
      %v1229 = vsel %vm732, %v1226, %v1228
      %v1230 = vrot.slane %v1193, 7
      %v1231 = vsel %vm732, %v1228, %v1230
      %v1232 = vrot.slane %v1194, 7
      %v1233 = vsel %vm732, %v1230, %v1232
      %v1234 = vrot.slane %v1195, 7
      %v1235 = vsel %vm732, %v1232, %v1234
      %v1236 = vrot.slane %v1196, 7
      %v1237 = vsel %vm732, %v1234, %v1236
      %v1238 = vrot.slane %v1197, 7
      %v1239 = vsel %vm732, %v1236, %v1238
      %v1240 = vsel %vm750, %v1225, 0
      %v1242 = vsel %vm750, %v1227, 0
      %v1244 = vsel %vm750, %v1229, 0
      %v1246 = vsel %vm750, %v1231, 0
      %v1248 = vsel %vm750, %v1233, 0
      %v1250 = vsel %vm750, %v1235, 0
      %v1252 = vsel %vm750, %v1237, 0
      %v1254 = vsel %vm750, %v1239, 0
      %1256 = vmatprep.subr.mxu0 0.0
      %1257 = vmatpush1.msra.mxu0 %v1198
      %1258 = vmatprep.subr.mxu0 0.0
      %1259 = vmatpush1.msra.mxu0 %v1199
      %1260 = vmatprep.subr.mxu0 0.0
      %1261 = vmatpush1.msra.mxu0 %v1200
      %1262 = vmatprep.subr.mxu0 0.0
      %1263 = vmatpush1.msra.mxu0 %v1201
      %1264 = vmatprep.subr.mxu0 0.0
      %1265 = vmatpush1.msra.mxu0 %v1202
      %1266 = vmatprep.subr.mxu0 0.0
      %1267 = vmatpush1.msra.mxu0 %v1203
      %1268 = vmatprep.subr.mxu0 0.0
      %1269 = vmatpush1.msra.mxu0 %v1204
      %1270 = vmatprep.subr.mxu0 0.0
      %1271 = vmatpush1.msra.mxu0 %v1205
      %1272 = vmatprep.subr.mxu0 0.0
      %1273 = vmatpush1.msra.mxu0 %v1206
      %1274 = vmatprep.subr.mxu0 0.0
      %1275 = vmatpush1.msra.mxu0 0.0
      %1276 = vmatprep.subr.mxu0 0.0
      %1277 = vmatpush1.msra.mxu0 0.0
      %1278 = vmatprep.subr.mxu0 0.0
      %1279 = vmatpush1.msra.mxu0 0.0
      %1280 = vmatprep.subr.mxu0 0.0
      %1281 = vmatpush1.msra.mxu0 0.0
      %1282 = vmatprep.subr.mxu0 0.0
      %1283 = vmatpush1.msra.mxu0 0.0
      %1284 = vmatprep.subr.mxu0 0.0
      %1285 = vmatpush1.msra.mxu0 0.0
      %1286 = vmatprep.subr.mxu0 0.0
      %1287 = vmatpush1.msra.mxu0 0.0
      %1288 = vmatprep.subr.mxu0 0.0
      %1289 = vmatpush1.msra.mxu0 0.0
      %1290 = vmatprep.subr.mxu0 0.0
      %1291 = vmatpush1.msra.mxu0 0.0
      %1292 = vmatprep.subr.mxu0 0.0
      %1293 = vmatpush1.msra.mxu0 0.0
      %1294 = vmatprep.subr.mxu0 0.0
      %1295 = vmatpush1.msra.mxu0 0.0
      %1296 = vmatprep.subr.mxu0 0.0
      %1297 = vmatpush1.msra.mxu0 0.0
      %1298 = vmatprep.subr.mxu0 0.0
      %1299 = vmatpush1.msra.mxu0 0.0
      %1300 = vmatprep.subr.mxu0 0.0
      %1301 = vmatpush1.msra.mxu0 0.0
      %1302 = vmatprep.subr.mxu0 0.0
      %1303 = vmatpush1.msra.mxu0 0.0
      %1304 = vmatprep.subr.mxu0 0.0
      %1305 = vmatpush1.msra.mxu0 0.0
      %1306 = vmatprep.subr.mxu0 0.0
      %1307 = vmatpush1.msra.mxu0 0.0
      %1308 = vmatprep.subr.mxu0 0.0
      %1309 = vmatpush1.msra.mxu0 0.0
      %1310 = vmatprep.subr.mxu0 0.0
      %1311 = vmatpush1.msra.mxu0 0.0
      %1312 = vmatprep.subr.mxu0 0.0
      %1313 = vmatpush1.msra.mxu0 0.0
      %1314 = vmatprep.subr.mxu0 0.0
      %1315 = vmatpush1.msra.mxu0 0.0
      %1316 = vmatprep.subr.mxu0 0.0
      %1317 = vmatpush1.msra.mxu0 0.0
      %1318 = vmatprep.subr.mxu0 0.0
      %1319 = vmatpush1.msra.mxu0 0.0
      %1320 = vmatprep.mubr.f32.mxu0 0.0
      %1321 = vmatmul.mubr.f32.gmra.mrb[0].mxu0 %v1240
      %v1322 = vpop.f32.mrb[0].mxu0
      %v1323 = vadd.f32 %v1212, %v1322
      %v1324 = vpop.f32.mrb[0].mxu0
      %1325 = vmatprep.mubr.f32.mxu0 0.0
      %1326 = vmatmul.mubr.f32.gmra.mrb[0].mxu0 %v1242
      %v1327 = vpop.f32.mrb[0].mxu0
      %v1328 = vadd.f32 %v1212, %v1327
      %v1329 = vpop.f32.mrb[0].mxu0
      %1330 = vmatprep.mubr.f32.mxu0 0.0
      %1331 = vmatmul.mubr.f32.gmra.mrb[0].mxu0 %v1244
      %v1332 = vpop.f32.mrb[0].mxu0
      %v1333 = vadd.f32 %v1212, %v1332
      %v1334 = vpop.f32.mrb[0].mxu0
      %1335 = vmatprep.mubr.f32.mxu0 0.0
      %1336 = vmatmul.mubr.f32.gmra.mrb[0].mxu0 %v1246
      %v1337 = vpop.f32.mrb[0].mxu0
      %v1338 = vadd.f32 %v1212, %v1337
      %v1339 = vpop.f32.mrb[0].mxu0
      %1340 = vmatprep.mubr.f32.mxu0 0.0
      %1341 = vmatmul.mubr.f32.gmra.mrb[0].mxu0 %v1248
      %v1342 = vpop.f32.mrb[0].mxu0
      %v1343 = vadd.f32 %v1212, %v1342
      %v1344 = vpop.f32.mrb[0].mxu0
      %1345 = vmatprep.mubr.f32.mxu0 0.0
      %1346 = vmatmul.mubr.f32.gmra.mrb[0].mxu0 %v1250
      %v1347 = vpop.f32.mrb[0].mxu0
      %v1348 = vadd.f32 %v1212, %v1347
      %v1349 = vpop.f32.mrb[0].mxu0
      %1350 = vmatprep.mubr.f32.mxu0 0.0
      %1351 = vmatmul.mubr.f32.gmra.mrb[0].mxu0 %v1252
      %v1352 = vpop.f32.mrb[0].mxu0
      %v1353 = vadd.f32 %v1212, %v1352
      %v1354 = vpop.f32.mrb[0].mxu0
      %1355 = vmatprep.mubr.f32.mxu0 0.0
      %1356 = vmatmul.mubr.f32.gmra.mrb[0].mxu0 %v1254
      %v1357 = vpop.f32.mrb[0].mxu0
      %v1358 = vadd.f32 %v1212, %v1357
      %v1359 = vpop.f32.mrb[0].mxu0
      %1360 = vdwg.mxu0
      %v1361 = vmax.f32 %v1323, 0.0
      %v1362 = vmax.f32 %v1328, 0.0
      %v1363 = vmax.f32 %v1333, 0.0
      %v1364 = vmax.f32 %v1338, 0.0
      %v1365 = vmax.f32 %v1343, 0.0
      %v1366 = vmax.f32 %v1348, 0.0
      %v1367 = vmax.f32 %v1353, 0.0
      %v1368 = vmax.f32 %v1358, 0.0
      %v1376 = vrot.slane %v1361, 1
      %v1377 = vsel %vm330, %v331, %v1376
      %v1378 = vrot.slane %v1362, 1
      %v1379 = vsel %vm330, %v1376, %v1378
      %v1380 = vrot.slane %v1363, 1
      %v1381 = vsel %vm330, %v1378, %v1380
      %v1382 = vrot.slane %v1364, 1
      %v1383 = vsel %vm330, %v1380, %v1382
      %v1384 = vrot.slane %v1365, 1
      %v1385 = vsel %vm330, %v1382, %v1384
      %v1386 = vrot.slane %v1366, 1
      %v1387 = vsel %vm330, %v1384, %v1386
      %v1388 = vrot.slane %v1367, 1
      %v1389 = vsel %vm330, %v1386, %v1388
      %1390 = vrot.lane.b32.xlu0 %v1377, 8
      %v1391 = vpop.permute.xlu0 %1390
      %1392 = vrot.lane.b32.xlu0 %v1379, 8
      %v1393 = vpop.permute.xlu0 %1392
      %1394 = vrot.lane.b32.xlu0 %v1381, 8
      %v1395 = vpop.permute.xlu0 %1394
      %1396 = vrot.lane.b32.xlu0 %v1383, 8
      %v1397 = vpop.permute.xlu0 %1396
      %1398 = vrot.lane.b32.xlu0 %v1385, 8
      %v1399 = vpop.permute.xlu0 %1398
      %1400 = vrot.lane.b32.xlu0 %v1387, 8
      %v1401 = vpop.permute.xlu0 %1400
      %1402 = vrot.lane.b32.xlu0 %v1389, 8
      %v1403 = vpop.permute.xlu0 %1402
      %1404 = vrot.lane.b32.xlu0 %v1388, 8
      %v1405 = vpop.permute.xlu0 %1404
      %v1415 = vrot.slane %v1361, 2
      %v1416 = vsel %vm374, %v375, %v1415
      %v1417 = vrot.slane %v1362, 2
      %v1418 = vsel %vm374, %v1415, %v1417
      %v1419 = vrot.slane %v1363, 2
      %v1420 = vsel %vm374, %v1417, %v1419
      %v1421 = vrot.slane %v1364, 2
      %v1422 = vsel %vm374, %v1419, %v1421
      %v1423 = vrot.slane %v1365, 2
      %v1424 = vsel %vm374, %v1421, %v1423
      %v1425 = vrot.slane %v1366, 2
      %v1426 = vsel %vm374, %v1423, %v1425
      %v1427 = vrot.slane %v1367, 2
      %v1428 = vsel %vm374, %v1425, %v1427
      %v1429 = vrot.slane %v1368, 2
      %v1430 = vsel %vm374, %v1427, %v1429
      %1431 = vrot.lane.b32.xlu0 %v1416, 16
      %v1432 = vpop.permute.xlu0 %1431
      %1433 = vrot.lane.b32.xlu0 %v1418, 16
      %v1434 = vpop.permute.xlu0 %1433
      %1435 = vrot.lane.b32.xlu0 %v1420, 16
      %v1436 = vpop.permute.xlu0 %1435
      %1437 = vrot.lane.b32.xlu0 %v1422, 16
      %v1438 = vpop.permute.xlu0 %1437
      %1439 = vrot.lane.b32.xlu0 %v1424, 16
      %v1440 = vpop.permute.xlu0 %1439
      %1441 = vrot.lane.b32.xlu0 %v1426, 16
      %v1442 = vpop.permute.xlu0 %1441
      %1443 = vrot.lane.b32.xlu0 %v1428, 16
      %v1444 = vpop.permute.xlu0 %1443
      %1445 = vrot.lane.b32.xlu0 %v1430, 16
      %v1446 = vpop.permute.xlu0 %1445
      %1455 = vrot.lane.b32.xlu0 %v1361, 24
      %v1456 = vpop.permute.xlu0 %1455
      %1457 = vrot.lane.b32.xlu0 %v1362, 24
      %v1458 = vpop.permute.xlu0 %1457
      %1459 = vrot.lane.b32.xlu0 %v1363, 24
      %v1460 = vpop.permute.xlu0 %1459
      %1461 = vrot.lane.b32.xlu0 %v1364, 24
      %v1462 = vpop.permute.xlu0 %1461
      %1463 = vrot.lane.b32.xlu0 %v1365, 24
      %v1464 = vpop.permute.xlu0 %1463
      %1465 = vrot.lane.b32.xlu0 %v1366, 24
      %v1466 = vpop.permute.xlu0 %1465
      %1467 = vrot.lane.b32.xlu0 %v1367, 24
      %v1468 = vpop.permute.xlu0 %1467
      %1469 = vrot.lane.b32.xlu0 %v1368, 24
      %v1470 = vpop.permute.xlu0 %1469
      %v1479 = vrot.slane %v1368, 1
      %v1480 = vsel %vm330, %v1388, %v1479
      %1481 = vrot.lane.b32.xlu0 %v1376, 32
      %v1482 = vpop.permute.xlu0 %1481
      %1483 = vrot.lane.b32.xlu0 %v1379, 32
      %v1484 = vpop.permute.xlu0 %1483
      %1485 = vrot.lane.b32.xlu0 %v1381, 32
      %v1486 = vpop.permute.xlu0 %1485
      %1487 = vrot.lane.b32.xlu0 %v1383, 32
      %v1488 = vpop.permute.xlu0 %1487
      %1489 = vrot.lane.b32.xlu0 %v1385, 32
      %v1490 = vpop.permute.xlu0 %1489
      %1491 = vrot.lane.b32.xlu0 %v1387, 32
      %v1492 = vpop.permute.xlu0 %1491
      %1493 = vrot.lane.b32.xlu0 %v1389, 32
      %v1494 = vpop.permute.xlu0 %1493
      %1495 = vrot.lane.b32.xlu0 %v1480, 32
      %v1496 = vpop.permute.xlu0 %1495
      %1497 = vrot.lane.b32.xlu0 %v1479, 32
      %v1498 = vpop.permute.xlu0 %1497
      %v1508 = vsel %vm374, %v1429, %v375
      %1509 = vrot.lane.b32.xlu0 %v1415, 40
      %v1510 = vpop.permute.xlu0 %1509
      %1511 = vrot.lane.b32.xlu0 %v1418, 40
      %v1512 = vpop.permute.xlu0 %1511
      %1513 = vrot.lane.b32.xlu0 %v1420, 40
      %v1514 = vpop.permute.xlu0 %1513
      %1515 = vrot.lane.b32.xlu0 %v1422, 40
      %v1516 = vpop.permute.xlu0 %1515
      %1517 = vrot.lane.b32.xlu0 %v1424, 40
      %v1518 = vpop.permute.xlu0 %1517
      %1519 = vrot.lane.b32.xlu0 %v1426, 40
      %v1520 = vpop.permute.xlu0 %1519
      %1521 = vrot.lane.b32.xlu0 %v1428, 40
      %v1522 = vpop.permute.xlu0 %1521
      %1523 = vrot.lane.b32.xlu0 %v1430, 40
      %v1524 = vpop.permute.xlu0 %1523
      %1525 = vrot.lane.b32.xlu0 %v1508, 40
      %v1526 = vpop.permute.xlu0 %1525
      %1536 = vrot.lane.b32.xlu0 %v1361, 48
      %v1537 = vpop.permute.xlu0 %1536
      %1538 = vrot.lane.b32.xlu0 %v1362, 48
      %v1539 = vpop.permute.xlu0 %1538
      %1540 = vrot.lane.b32.xlu0 %v1363, 48
      %v1541 = vpop.permute.xlu0 %1540
      %1542 = vrot.lane.b32.xlu0 %v1364, 48
      %v1543 = vpop.permute.xlu0 %1542
      %1544 = vrot.lane.b32.xlu0 %v1365, 48
      %v1545 = vpop.permute.xlu0 %1544
      %1546 = vrot.lane.b32.xlu0 %v1366, 48
      %v1547 = vpop.permute.xlu0 %1546
      %1548 = vrot.lane.b32.xlu0 %v1367, 48
      %v1549 = vpop.permute.xlu0 %1548
      %1550 = vrot.lane.b32.xlu0 %v1368, 48
      %v1551 = vpop.permute.xlu0 %1550
      %v1560 = vsel %vm330, %v1479, %v331
      %1561 = vrot.lane.b32.xlu0 %v1378, 56
      %v1562 = vpop.permute.xlu0 %1561
      %1563 = vrot.lane.b32.xlu0 %v1381, 56
      %v1564 = vpop.permute.xlu0 %1563
      %1565 = vrot.lane.b32.xlu0 %v1383, 56
      %v1566 = vpop.permute.xlu0 %1565
      %1567 = vrot.lane.b32.xlu0 %v1385, 56
      %v1568 = vpop.permute.xlu0 %1567
      %1569 = vrot.lane.b32.xlu0 %v1387, 56
      %v1570 = vpop.permute.xlu0 %1569
      %1571 = vrot.lane.b32.xlu0 %v1389, 56
      %v1572 = vpop.permute.xlu0 %1571
      %1573 = vrot.lane.b32.xlu0 %v1480, 56
      %v1574 = vpop.permute.xlu0 %1573
      %1575 = vrot.lane.b32.xlu0 %v1560, 56
      %v1576 = vpop.permute.xlu0 %1575
      %1585 = vrot.lane.b32.xlu0 %v1417, 64
      %v1586 = vpop.permute.xlu0 %1585
      %1587 = vrot.lane.b32.xlu0 %v1420, 64
      %v1588 = vpop.permute.xlu0 %1587
      %1589 = vrot.lane.b32.xlu0 %v1422, 64
      %v1590 = vpop.permute.xlu0 %1589
      %1591 = vrot.lane.b32.xlu0 %v1424, 64
      %v1592 = vpop.permute.xlu0 %1591
      %1593 = vrot.lane.b32.xlu0 %v1426, 64
      %v1594 = vpop.permute.xlu0 %1593
      %1595 = vrot.lane.b32.xlu0 %v1428, 64
      %v1596 = vpop.permute.xlu0 %1595
      %1597 = vrot.lane.b32.xlu0 %v1430, 64
      %v1598 = vpop.permute.xlu0 %1597
      %1599 = vrot.lane.b32.xlu0 %v1508, 64
      %v1600 = vpop.permute.xlu0 %1599
      %v1609 = vsel %vm586, 0.0, %v1391
      %v1610 = vsel %vm586, %v1361, %v1393
      %v1611 = vsel %vm586, %v1362, %v1395
      %v1612 = vsel %vm586, %v1363, %v1397
      %v1613 = vsel %vm586, %v1364, %v1399
      %v1614 = vsel %vm586, %v1365, %v1401
      %v1615 = vsel %vm586, %v1366, %v1403
      %v1616 = vsel %vm586, %v1367, %v1405
      %v1617 = vsel %vm596, %v1609, %v1432
      %v1618 = vsel %vm596, %v1610, %v1434
      %v1619 = vsel %vm596, %v1611, %v1436
      %v1620 = vsel %vm596, %v1612, %v1438
      %v1621 = vsel %vm596, %v1613, %v1440
      %v1622 = vsel %vm596, %v1614, %v1442
      %v1623 = vsel %vm596, %v1615, %v1444
      %v1624 = vsel %vm596, %v1616, %v1446
      %v1625 = vsel %vm606, %v1617, %v1456
      %v1626 = vsel %vm606, %v1618, %v1458
      %v1627 = vsel %vm606, %v1619, %v1460
      %v1628 = vsel %vm606, %v1620, %v1462
      %v1629 = vsel %vm606, %v1621, %v1464
      %v1630 = vsel %vm606, %v1622, %v1466
      %v1631 = vsel %vm606, %v1623, %v1468
      %v1632 = vsel %vm606, %v1624, %v1470
      %v1633 = vsel %vm616, %v607, %v1482
      %v1634 = vsel %vm616, %v1625, %v1484
      %v1635 = vsel %vm616, %v1626, %v1486
      %v1636 = vsel %vm616, %v1627, %v1488
      %v1637 = vsel %vm616, %v1628, %v1490
      %v1638 = vsel %vm616, %v1629, %v1492
      %v1639 = vsel %vm616, %v1630, %v1494
      %v1640 = vsel %vm616, %v1631, %v1496
      %v1641 = vsel %vm616, %v1632, %v1498
      %v1642 = vsel %vm626, %v1633, %v1510
      %v1643 = vsel %vm626, %v1634, %v1512
      %v1644 = vsel %vm626, %v1635, %v1514
      %v1645 = vsel %vm626, %v1636, %v1516
      %v1646 = vsel %vm626, %v1637, %v1518
      %v1647 = vsel %vm626, %v1638, %v1520
      %v1648 = vsel %vm626, %v1639, %v1522
      %v1649 = vsel %vm626, %v1640, %v1524
      %v1650 = vsel %vm626, %v1641, %v1526
      %v1651 = vsel %vm636, %v1642, %v1537
      %v1652 = vsel %vm636, %v1643, %v1539
      %v1653 = vsel %vm636, %v1644, %v1541
      %v1654 = vsel %vm636, %v1645, %v1543
      %v1655 = vsel %vm636, %v1646, %v1545
      %v1656 = vsel %vm636, %v1647, %v1547
      %v1657 = vsel %vm636, %v1648, %v1549
      %v1658 = vsel %vm636, %v1649, %v1551
      %v1659 = vsel %vm636, %v1650, %v520
      %v1660 = vsel %vm646, %v1651, %v1562
      %v1661 = vsel %vm646, %v1652, %v1564
      %v1662 = vsel %vm646, %v1653, %v1566
      %v1663 = vsel %vm646, %v1654, %v1568
      %v1664 = vsel %vm646, %v1655, %v1570
      %v1665 = vsel %vm646, %v1656, %v1572
      %v1666 = vsel %vm646, %v1657, %v1574
      %v1667 = vsel %vm646, %v1658, %v1576
      %v1668 = vsel %vm646, %v1659, %v548
      %v1669 = vsel %vm656, %v1660, %v1586
      %v1670 = vsel %vm656, %v1661, %v1588
      %v1671 = vsel %vm656, %v1662, %v1590
      %v1672 = vsel %vm656, %v1663, %v1592
      %v1673 = vsel %vm656, %v1664, %v1594
      %v1674 = vsel %vm656, %v1665, %v1596
      %v1675 = vsel %vm656, %v1666, %v1598
      %v1676 = vsel %vm656, %v1667, %v1600
      %v1677 = vsel %vm656, %v1668, %v576
      %v1678 = vmul.f32 %v1669, %v674
      %v1679 = vmul.f32 %v1670, %v676
      %v1680 = vmul.f32 %v1671, %v678
      %v1681 = vmul.f32 %v1672, %v680
      %v1682 = vmul.f32 %v1673, %v682
      %v1683 = vmul.f32 %v1674, %v684
      %v1684 = vmul.f32 %v1675, %v686
      %v1685 = vmul.f32 %v1676, %v688
      %v1686 = vmul.f32 %v1677, %v687
      %v1687 = vld [vmem:[%s6] sm:$0xff]
      %v1688 = vld [vmem:[%s6 + $0x8] sm:$0xff]
      %v1689 = vld [vmem:[%s6 + $0x10] sm:$0xff]
      %v1690 = vld [vmem:[%s6 + $0x18] sm:$0xff]
      %v1691 = vld [vmem:[%s6 + $0x20] sm:$0xff]
      %v1692 = vld [vmem:[%s6 + $0x28] sm:$0xff]
      %v1693 = vld [vmem:[%s6 + $0x30] sm:$0xff]
      %v1694 = vld [vmem:[%s6 + $0x38] sm:$0xff]
      %v1695 = vld [vmem:[%s6 + $0x40] sm:$0xff]
      %v1696 = vld [vmem:[%s7] sm:$0x1]
      %v1698 = vlaneseq
      %v1699 = vshrl.u32 %v1698, 7
      %v1700 = vsub.s32 0, %v1699
      %v1701 = vrot.slane %v1696, %v1700
      %v1712 = vrot.slane %v1678, 7
      %v1713 = vrot.slane %v1679, 7
      %v1714 = vsel %vm732, %v1712, %v1713
      %v1715 = vrot.slane %v1680, 7
      %v1716 = vsel %vm732, %v1713, %v1715
      %v1717 = vrot.slane %v1681, 7
      %v1718 = vsel %vm732, %v1715, %v1717
      %v1719 = vrot.slane %v1682, 7
      %v1720 = vsel %vm732, %v1717, %v1719
      %v1721 = vrot.slane %v1683, 7
      %v1722 = vsel %vm732, %v1719, %v1721
      %v1723 = vrot.slane %v1684, 7
      %v1724 = vsel %vm732, %v1721, %v1723
      %v1725 = vrot.slane %v1685, 7
      %v1726 = vsel %vm732, %v1723, %v1725
      %v1727 = vrot.slane %v1686, 7
      %v1728 = vsel %vm732, %v1725, %v1727
      %v1729 = vsel %vm750, %v1714, 0
      %v1731 = vsel %vm750, %v1716, 0
      %v1733 = vsel %vm750, %v1718, 0
      %v1735 = vsel %vm750, %v1720, 0
      %v1737 = vsel %vm750, %v1722, 0
      %v1739 = vsel %vm750, %v1724, 0
      %v1741 = vsel %vm750, %v1726, 0
      %v1743 = vsel %vm750, %v1728, 0
      %1745 = vmatprep.subr.mxu0 0.0
      %1746 = vmatpush1.msra.mxu0 %v1687
      %1747 = vmatprep.subr.mxu0 0.0
      %1748 = vmatpush1.msra.mxu0 %v1688
      %1749 = vmatprep.subr.mxu0 0.0
      %1750 = vmatpush1.msra.mxu0 %v1689
      %1751 = vmatprep.subr.mxu0 0.0
      %1752 = vmatpush1.msra.mxu0 %v1690
      %1753 = vmatprep.subr.mxu0 0.0
      %1754 = vmatpush1.msra.mxu0 %v1691
      %1755 = vmatprep.subr.mxu0 0.0
      %1756 = vmatpush1.msra.mxu0 %v1692
      %1757 = vmatprep.subr.mxu0 0.0
      %1758 = vmatpush1.msra.mxu0 %v1693
      %1759 = vmatprep.subr.mxu0 0.0
      %1760 = vmatpush1.msra.mxu0 %v1694
      %1761 = vmatprep.subr.mxu0 0.0
      %1762 = vmatpush1.msra.mxu0 %v1695
      %1763 = vmatprep.subr.mxu0 0.0
      %1764 = vmatpush1.msra.mxu0 0.0
      %1765 = vmatprep.subr.mxu0 0.0
      %1766 = vmatpush1.msra.mxu0 0.0
      %1767 = vmatprep.subr.mxu0 0.0
      %1768 = vmatpush1.msra.mxu0 0.0
      %1769 = vmatprep.subr.mxu0 0.0
      %1770 = vmatpush1.msra.mxu0 0.0
      %1771 = vmatprep.subr.mxu0 0.0
      %1772 = vmatpush1.msra.mxu0 0.0
      %1773 = vmatprep.subr.mxu0 0.0
      %1774 = vmatpush1.msra.mxu0 0.0
      %1775 = vmatprep.subr.mxu0 0.0
      %1776 = vmatpush1.msra.mxu0 0.0
      %1777 = vmatprep.subr.mxu0 0.0
      %1778 = vmatpush1.msra.mxu0 0.0
      %1779 = vmatprep.subr.mxu0 0.0
      %1780 = vmatpush1.msra.mxu0 0.0
      %1781 = vmatprep.subr.mxu0 0.0
      %1782 = vmatpush1.msra.mxu0 0.0
      %1783 = vmatprep.subr.mxu0 0.0
      %1784 = vmatpush1.msra.mxu0 0.0
      %1785 = vmatprep.subr.mxu0 0.0
      %1786 = vmatpush1.msra.mxu0 0.0
      %1787 = vmatprep.subr.mxu0 0.0
      %1788 = vmatpush1.msra.mxu0 0.0
      %1789 = vmatprep.subr.mxu0 0.0
      %1790 = vmatpush1.msra.mxu0 0.0
      %1791 = vmatprep.subr.mxu0 0.0
      %1792 = vmatpush1.msra.mxu0 0.0
      %1793 = vmatprep.subr.mxu0 0.0
      %1794 = vmatpush1.msra.mxu0 0.0
      %1795 = vmatprep.subr.mxu0 0.0
      %1796 = vmatpush1.msra.mxu0 0.0
      %1797 = vmatprep.subr.mxu0 0.0
      %1798 = vmatpush1.msra.mxu0 0.0
      %1799 = vmatprep.subr.mxu0 0.0
      %1800 = vmatpush1.msra.mxu0 0.0
      %1801 = vmatprep.subr.mxu0 0.0
      %1802 = vmatpush1.msra.mxu0 0.0
      %1803 = vmatprep.subr.mxu0 0.0
      %1804 = vmatpush1.msra.mxu0 0.0
      %1805 = vmatprep.subr.mxu0 0.0
      %1806 = vmatpush1.msra.mxu0 0.0
      %1807 = vmatprep.subr.mxu0 0.0
      %1808 = vmatpush1.msra.mxu0 0.0
      %1809 = vmatprep.mubr.f32.mxu0 0.0
      %1810 = vmatmul.mubr.f32.gmra.mrb[0].mxu0 %v1729
      %v1811 = vpop.f32.mrb[0].mxu0
      %v1812 = vadd.f32 %v1701, %v1811
      %v1813 = vpop.f32.mrb[0].mxu0
      %1814 = vmatprep.mubr.f32.mxu0 0.0
      %1815 = vmatmul.mubr.f32.gmra.mrb[0].mxu0 %v1731
      %v1816 = vpop.f32.mrb[0].mxu0
      %v1817 = vadd.f32 %v1701, %v1816
      %v1818 = vpop.f32.mrb[0].mxu0
      %1819 = vmatprep.mubr.f32.mxu0 0.0
      %1820 = vmatmul.mubr.f32.gmra.mrb[0].mxu0 %v1733
      %v1821 = vpop.f32.mrb[0].mxu0
      %v1822 = vadd.f32 %v1701, %v1821
      %v1823 = vpop.f32.mrb[0].mxu0
      %1824 = vmatprep.mubr.f32.mxu0 0.0
      %1825 = vmatmul.mubr.f32.gmra.mrb[0].mxu0 %v1735
      %v1826 = vpop.f32.mrb[0].mxu0
      %v1827 = vadd.f32 %v1701, %v1826
      %v1828 = vpop.f32.mrb[0].mxu0
      %1829 = vmatprep.mubr.f32.mxu0 0.0
      %1830 = vmatmul.mubr.f32.gmra.mrb[0].mxu0 %v1737
      %v1831 = vpop.f32.mrb[0].mxu0
      %v1832 = vadd.f32 %v1701, %v1831
      %v1833 = vpop.f32.mrb[0].mxu0
      %1834 = vmatprep.mubr.f32.mxu0 0.0
      %1835 = vmatmul.mubr.f32.gmra.mrb[0].mxu0 %v1739
      %v1836 = vpop.f32.mrb[0].mxu0
      %v1837 = vadd.f32 %v1701, %v1836
      %v1838 = vpop.f32.mrb[0].mxu0
      %1839 = vmatprep.mubr.f32.mxu0 0.0
      %1840 = vmatmul.mubr.f32.gmra.mrb[0].mxu0 %v1741
      %v1841 = vpop.f32.mrb[0].mxu0
      %v1842 = vadd.f32 %v1701, %v1841
      %v1843 = vpop.f32.mrb[0].mxu0
      %1844 = vmatprep.mubr.f32.mxu0 0.0
      %1845 = vmatmul.mubr.f32.gmra.mrb[0].mxu0 %v1743
      %v1846 = vpop.f32.mrb[0].mxu0
      %v1847 = vadd.f32 %v1701, %v1846
      %v1848 = vpop.f32.mrb[0].mxu0
      %1849 = vdwg.mxu0
      %v1850 = vxor.u32 %v1812, 2147483648
      %v1851 = vxor.u32 %v1817, 2147483648
      %v1852 = vxor.u32 %v1822, 2147483648
      %v1853 = vxor.u32 %v1827, 2147483648
      %v1854 = vxor.u32 %v1832, 2147483648
      %v1855 = vxor.u32 %v1837, 2147483648
      %v1856 = vxor.u32 %v1842, 2147483648
      %v1857 = vxor.u32 %v1847, 2147483648
      %v1858 = vmul.f32 %v1850, 1.442695
      %v1859 = vpow.pop %v1858
      %v1860 = vmul.f32 %v1851, 1.442695
      %v1861 = vpow.pop %v1860
      %v1862 = vmul.f32 %v1852, 1.442695
      %v1863 = vpow.pop %v1862
      %v1864 = vmul.f32 %v1853, 1.442695
      %v1865 = vpow.pop %v1864
      %v1866 = vmul.f32 %v1854, 1.442695
      %v1867 = vpow.pop %v1866
      %v1868 = vmul.f32 %v1855, 1.442695
      %v1869 = vpow.pop %v1868
      %v1870 = vmul.f32 %v1856, 1.442695
      %v1871 = vpow.pop %v1870
      %v1872 = vmul.f32 %v1857, 1.442695
      %v1873 = vpow.pop %v1872
      %v1874 = vadd.f32 %v1859, 1.0
      %v1875 = vadd.f32 %v1861, 1.0
      %v1876 = vadd.f32 %v1863, 1.0
      %v1877 = vadd.f32 %v1865, 1.0
      %v1878 = vadd.f32 %v1867, 1.0
      %v1879 = vadd.f32 %v1869, 1.0
      %v1880 = vadd.f32 %v1871, 1.0
      %v1881 = vadd.f32 %v1873, 1.0
      %v1882 = vrcp.pop %v1874
      %v1883 = vmul.f32 1.0, %v1882
      %v1884 = vrcp.pop %v1875
      %v1885 = vmul.f32 1.0, %v1884
      %v1886 = vrcp.pop %v1876
      %v1887 = vmul.f32 1.0, %v1886
      %v1888 = vrcp.pop %v1877
      %v1889 = vmul.f32 1.0, %v1888
      %v1890 = vrcp.pop %v1878
      %v1891 = vmul.f32 1.0, %v1890
      %v1892 = vrcp.pop %v1879
      %v1893 = vmul.f32 1.0, %v1892
      %v1894 = vrcp.pop %v1880
      %v1895 = vmul.f32 1.0, %v1894
      %v1896 = vrcp.pop %v1881
      %v1897 = vmul.f32 1.0, %v1896
      %vm1898 = vcmask 121856
      %1899 = vst.msk [vmem:[%s305] sm:$0xff] %vm1898, %v1883
      %1900 = vst.msk [vmem:[%s305 + $0x8] sm:$0xff] %vm1898, %v1885
      %1901 = vst.msk [vmem:[%s305 + $0x10] sm:$0xff] %vm1898, %v1887
      %1902 = vst.msk [vmem:[%s305 + $0x18] sm:$0xff] %vm1898, %v1889
      %1903 = vst.msk [vmem:[%s305 + $0x20] sm:$0xff] %vm1898, %v1891
      %1904 = vst.msk [vmem:[%s305 + $0x28] sm:$0xff] %vm1898, %v1893
      %1905 = vst.msk [vmem:[%s305 + $0x30] sm:$0xff] %vm1898, %v1895
      %1906 = vst.msk [vmem:[%s305 + $0x38] sm:$0xff] %vm1898, %v1897
      %p1907 = scmp.lt.s32.totalorder %s19, 1
      %s1908 = scalar_select %p1907, %s19, 1
      %s1909 = smul.addr %s1908, 8
      %s1910 = smul.addr %s1909, 8
      %s1911 = scalar_lea.vmem %s8, %s1910
      // Predicated region
      $region53: #{classifier_head_forward.1} parent=51 // pred_check
        %p1912 = pneg %p210
      $region54: #{classifier_head_forward.1} parent=51 // pred_check_branch
        %1914 = sbr.rel (%p1912) target = $region56
      $region55: #{classifier_head_forward.1} parent=51 // pred_region
        _
      $region56: #{classifier_head_forward.1} parent=51 // pred_fallthru
        _
    $region52: #{classifier_head_forward.1} parent=5 // pred_fallthru
      _
    %p1915 = scmp.le.s32.totalorder 2, %s14
    // Predicated region
    $region57: #{classifier_head_forward.1} parent=5 // pred_check
      %p1916 = pneg %p1915
    $region58: #{classifier_head_forward.1} parent=5 // pred_check_branch
      %1918 = sbr.rel (%p1916) target = $region60
    $region59: #{classifier_head_forward.1} parent=5 // pred_region
      %s1919 = ssub.s32 %s14, 2
      // Predicated region
      $region61: #{classifier_head_forward.1} parent=59 // pred_check
        %p1920 = pneg %p216
      $region62: #{classifier_head_forward.1} parent=59 // pred_check_branch
        %1922 = sbr.rel (%p1920) target = $region64
      $region63: #{classifier_head_forward.1} parent=59 // pred_region
        %p1923 = scmp.lt.s32.totalorder %s20, 1
        %s1924 = scalar_select %p1923, %s20, 1
        %s1925 = smul.addr %s1924, 8
        %s1926 = smul.addr %s1925, 8
        %s1927 = scalar_lea.vmem %s8, %s1926
      $region64: #{classifier_head_forward.1} parent=59 // pred_fallthru
        _
    $region60: #{classifier_head_forward.1} parent=5 // pred_fallthru
      _
  $region6: #{classifier_head_forward.1} parent=0 // loop_footer
    %s18 = sadd.s32 1, %s14
  $region7: #{classifier_head_forward.1} parent=0 // loop_footer_branch
    %13 = sbr.rel target = $region3
  $region8: #{classifier_head_forward.1} parent=0 // loop_exit
    _

</llo_original>
